<compile_context>
chip_gen: v5e
topology: v5e:2x2
jax: 0.10.0
libtpu: 0.0.40
codegen_flags: <defaults>
</compile_context>

<pallas_src>
import functools

import jax
import jax.numpy as jnp
import numpy as np
from jax import lax
from jax.experimental import pallas as pl
from jax.experimental.pallas import tpu as pltpu


def _round_up(v, m):
    return ((v + m - 1) // m) * m


def _sublane_multiple(dtype):
    size = jnp.dtype(dtype).itemsize
    if size >= 4:
        return 8
    if size == 2:
        return 16
    return 32


def _vmem_capacity_bytes():
    """Physical per-core VMEM; conservative (v7x) default if the query fails."""
    try:
        info = pltpu.get_tpu_info()
        cap = getattr(info, "vmem_capacity_bytes", None)
        if cap:
            return int(cap)
    except Exception:
        pass
    return 64 * 1024 * 1024


def _find_divisor_tile(total, mult, target):
    """Largest multiple-of-`mult` divisor of `total` that is <= target."""
    t = (min(target, total) // mult) * mult
    while t >= mult:
        if total % t == 0:
            return t
        t -= mult
    return None


def spiral_reader_kernel(x_ref, w1m_ref, w1x_ref, w1n_ref, b1_ref, w2_ref, b2_ref,
                         out_ref, sum_acc, max_acc, min_acc,
                         *, inv_n, n_nodes, feat, k_pack, tile_groups, chunk,
                         num_full, rem, mask_tail):
    n = pl.program_id(1)
    cf = k_pack * feat

    @pl.when(n == 0)
    def _init():
        sum_acc[...] = jnp.zeros(sum_acc.shape, sum_acc.dtype)
        max_acc[...] = jnp.full(max_acc.shape, -jnp.inf, max_acc.dtype)
        min_acc[...] = jnp.full(min_acc.shape, jnp.inf, min_acc.dtype)

    def accumulate(start, rows):
        # Single pass over one (TB, rows, CF) sublane chunk: each vreg is loaded
        # once and immediately consumed by the three elementwise updates.
        xc = x_ref[:, pl.ds(start, rows), :].astype(jnp.float32)
        if mask_tail:
            # Padded groups are real zeros (wrapper jnp.pad): sum is already
            # neutral; only max/min need +/-inf masking of node indices >= N.
            r_iota = lax.broadcasted_iota(jnp.int32, (rows, cf), 0)
            slot = lax.broadcasted_iota(jnp.int32, (rows, cf), 1) // feat
            node = (n * tile_groups + start + r_iota) * k_pack + slot
            valid = (node < n_nodes)[None]
            xmx = jnp.where(valid, xc, -jnp.inf)
            xmn = jnp.where(valid, xc, jnp.inf)
        else:
            xmx = xmn = xc
        sum_acc[:, 0:rows, :] = sum_acc[:, 0:rows, :] + xc
        max_acc[:, 0:rows, :] = jnp.maximum(max_acc[:, 0:rows, :], xmx)
        min_acc[:, 0:rows, :] = jnp.minimum(min_acc[:, 0:rows, :], xmn)

    if num_full > 0:
        def body(c, carry):
            accumulate(pl.multiple_of(c * chunk, chunk), chunk)
            return carry
        lax.fori_loop(0, num_full, body, 0, unroll=min(num_full, 8))

    if rem > 0:
        accumulate(num_full * chunk, rem)

    @pl.when(n == pl.num_programs(1) - 1)
    def _finalize():
        # Fold the sublane chunk dim, then the k interleaved lane slots.
        s = jnp.sum(sum_acc[...], axis=1)      # (TB, CF)
        mx = jnp.max(max_acc[...], axis=1)
        mn = jnp.min(min_acc[...], axis=1)

        def fold(v, op):
            r = v[:, 0:feat]
            for j in range(1, k_pack):
                r = op(r, v[:, j * feat:(j + 1) * feat])
            return r

        mean_f = fold(s, jnp.add) * inv_n      # sum-then-scale, once per B tile
        max_f = fold(mx, jnp.maximum)
        min_f = fold(mn, jnp.minimum)

        # hstack([mean,max,min]) @ w1 == three K=F dots (no lane-misaligned concat).
        h = (jnp.dot(mean_f, w1m_ref[...], preferred_element_type=jnp.float32)
             + jnp.dot(max_f, w1x_ref[...], preferred_element_type=jnp.float32)
             + jnp.dot(min_f, w1n_ref[...], preferred_element_type=jnp.float32)
             + b1_ref[...])
        h = jnp.maximum(h, 0.0)                # ReLU; Dropout(p=0) is identity
        out = jnp.dot(h, w2_ref[...], preferred_element_type=jnp.float32) + b2_ref[...]
        out_ref[...] = out.astype(out_ref.dtype)   # lane-dense (TB, 128*k) store


def spiral_mesh_reader(x, w1, b1, w2, b2):
    """x: (B, N, F); w1: (3F, H); b1: (1,H)/(H,); w2: (H, O); b2: (1,O)/(O,) -> (B, O)."""
    B, N, F = x.shape
    H = w1.shape[1]
    O = w2.shape[1]
    assert w1.shape[0] == 3 * F

    b1 = jnp.reshape(b1, (1, H))
    b2 = jnp.reshape(b2, (1, -1))

    itemsize = jnp.dtype(x.dtype).itemsize
    sub = _sublane_multiple(x.dtype)

    # ---- (1) lane-dense feature packing: (B, N, F) -> (B, G, k*F) ------------
    k_pack = 1
    if 0 < F < 128 and 128 % F == 0:
        k_pack = 128 // F
        while k_pack > 1 and N % k_pack != 0:
            k_pack //= 2
    CF = k_pack * F
    G = N // k_pack
    x_packed = x.reshape(B, G, CF)            # free row-major metadata reshape

    # ---- (2) generation-aware VMEM budgets -----------------------------------
    vmem_cap = _vmem_capacity_bytes()
    if vmem_cap >= 100 * 1024 * 1024:         # v5e / v6e: 128 MiB physical VMEM
        block_budget = 12 * 1024 * 1024
        vmem_ceiling = 100 * 1024 * 1024
    else:                                     # v7x: 64 MiB physical VMEM
        block_budget = 6 * 1024 * 1024
        vmem_ceiling = 44 * 1024 * 1024

    # ---- (3) batch tile: >=2 programs on the "parallel" axis when B >= 16 ----
    if B <= 8:
        TB = B                                # block dim == full batch dim
    else:
        n_bt = max(2 if B >= 16 else 1, pl.cdiv(B, 64))
        TB = min(_round_up(pl.cdiv(B, n_bt), 8), (B // 8) * 8)
    n_btiles = pl.cdiv(B, TB)                 # batch tail rows are row-independent;
                                              # their out-of-range outputs are dropped.

    # ---- node/group tiling: largest multiple-of-`sub` tile under the budget --
    CH = sub
    row_bytes = TB * CF * itemsize
    tg_target = max(CH, (block_budget // max(1, row_bytes)) // CH * CH)
    if G <= tg_target:
        TG = G
        G_pad = G
    else:
        TG = _find_divisor_tile(G, CH, tg_target)
        if TG is None:
            TG = tg_target                    # pad + mask tail instead of one huge block
        G_pad = _round_up(G, TG)
    n_ntiles = G_pad // TG
    mask_tail = G_pad != G
    if mask_tail:
        # Rare (no nice divisor): zero-pad the group axis; masked in-kernel.
        x_packed = jnp.pad(x_packed, ((0, 0), (0, G_pad - G), (0, 0)))
    num_full = TG // CH
    rem = TG % CH

    # ---- lane-dense output: pad tiny O up to 128 lanes (unmasked vst) --------
    O_pad = _round_up(max(O, 1), 128)
    w2p = jnp.zeros((H, O_pad), w2.dtype).at[:, :O].set(w2)
    b2p = jnp.zeros((1, O_pad), b2.dtype).at[:, :O].set(b2)

    # ---- split w1 per readout: three K=F dots, no lane-misaligned concat -----
    w1_mean, w1_max, w1_min = w1[:F], w1[F:2 * F], w1[2 * F:3 * F]

    # ---- VMEM accounting (2x pipelined x, weights counted 2x to be safe) -----
    f32 = 4

    def pad2d(r, c, isz):
        return _round_up(r, 8) * _round_up(c, 128) * isz

    x_block = TB * _round_up(TG, sub) * _round_up(CF, 128) * itemsize
    w_bytes = (3 * pad2d(F, H, f32) + pad2d(1, H, f32)
               + pad2d(H, O_pad, f32) + pad2d(1, O_pad, f32))
    acc_bytes = 3 * TB * CH * _round_up(CF, 128) * f32
    out_block = 2 * _round_up(TB, 8) * O_pad * f32
    vmem_est = 2 * x_block + 2 * w_bytes + out_block + acc_bytes
    vmem_limit = int(min(vmem_ceiling, max(24 * 1024 * 1024, 2 * vmem_est)))

    kernel = functools.partial(
        spiral_reader_kernel, inv_n=float(1.0 / N), n_nodes=N, feat=F,
        k_pack=k_pack, tile_groups=TG, chunk=CH, num_full=num_full, rem=rem,
        mask_tail=mask_tail)

    def build(single_buffer_weights):
        def const_spec(shape):
            idx = lambda b, n: (0,) * len(shape)
            if single_buffer_weights:
                # Resident weights never change across grid steps -> 1 buffer.
                return pl.BlockSpec(shape, idx, pipeline_mode=pl.Buffered(1))
            return pl.BlockSpec(shape, idx)

        return pl.pallas_call(
            kernel,
            out_shape=jax.ShapeDtypeStruct((B, O_pad), jnp.float32),
            grid_spec=pltpu.PrefetchScalarGridSpec(
                num_scalar_prefetch=0,
                grid=(n_btiles, n_ntiles),
                in_specs=[
                    pl.BlockSpec((TB, TG, CF), lambda b, n: (b, n, 0)),   # x chunks
                    const_spec((F, H)),        # w1[:F]   (mean)
                    const_spec((F, H)),        # w1[F:2F] (max)
                    const_spec((F, H)),        # w1[2F:]  (min)
                    const_spec((1, H)),        # b1
                    const_spec((H, O_pad)),    # w2 (lane padded)
                    const_spec((1, O_pad)),    # b2 (lane padded)
                ],
                out_specs=pl.BlockSpec((TB, O_pad), lambda b, n: (b, 0)),
                scratch_shapes=[
                    pltpu.VMEM((TB, CH, CF), jnp.float32),   # running sum (partial rows)
                    pltpu.VMEM((TB, CH, CF), jnp.float32),   # running max
                    pltpu.VMEM((TB, CH, CF), jnp.float32),   # running min
                ],
            ),
            compiler_params=pltpu.CompilerParams(
                dimension_semantics=("parallel", "arbitrary"),
                vmem_limit_bytes=vmem_limit,
            ),
        )

    args = (x_packed, w1_mean, w1_max, w1_min, b1, w2p, b2p)
    try:
        out_padded = build(True)(*args)
    except Exception:
        # Fallback for Pallas builds without BlockSpec(pipeline_mode=...).
        out_padded = build(False)(*args)

    return out_padded[:, :O]


def reference(x, w1, b1, w2, b2):
    mean_f = jnp.mean(x, axis=1)
    max_f = jnp.max(x, axis=1)
    min_f = jnp.min(x, axis=1)
    feats = jnp.concatenate([mean_f, max_f, min_f], axis=-1)
    h = jnp.maximum(feats @ w1 + jnp.reshape(b1, (1, -1)), 0.0)
    return h @ w2 + jnp.reshape(b2, (1, -1))


if __name__ == "__main__":
    B, N, F = 2, 16, 32          # batch graphs, nodes per graph, feature dim
    H, O = 32, 8                 # mlp_hidden_dim, out_dim; in_dim = 3*F = 96

    key = jax.random.PRNGKey(0)
    kx, k1, kb1, k2, kb2 = jax.random.split(key, 5)

    x = jax.random.normal(kx, (B, N, F), dtype=jnp.float32)
    w1 = jax.random.normal(k1, (3 * F, H), dtype=jnp.float32) * 0.1
    b1 = jax.random.normal(kb1, (1, H), dtype=jnp.float32) * 0.1
    w2 = jax.random.normal(k2, (H, O), dtype=jnp.float32) * 0.1
    b2 = jax.random.normal(kb2, (1, O), dtype=jnp.float32) * 0.1

    out = jax.block_until_ready(spiral_mesh_reader(x, w1, b1, w2, b2))
    ref = jax.block_until_ready(reference(x, w1, b1, w2, b2))

    assert out.shape == (B, O), out.shape
    np.testing.assert_allclose(np.asarray(out), np.asarray(ref), rtol=1e-4, atol=1e-4)
    print("KERNEL_OK")
</pallas_src>

<mosaic_0001>
module attributes {stable_mosaic.version = 11 : i64} {
  func.func @spiral_reader_kernel(%arg0: i32, %arg1: i32, %arg2: memref<2x4x128xf32, #tpu.memory_space<vmem>>, %arg3: memref<32x32xf32, #tpu.memory_space<vmem>>, %arg4: memref<32x32xf32, #tpu.memory_space<vmem>>, %arg5: memref<32x32xf32, #tpu.memory_space<vmem>>, %arg6: memref<1x32xf32, #tpu.memory_space<vmem>>, %arg7: memref<32x128xf32, #tpu.memory_space<vmem>>, %arg8: memref<1x128xf32, #tpu.memory_space<vmem>>, %arg9: memref<2x128xf32, #tpu.memory_space<vmem>>, %arg10: memref<2x8x128xf32, #tpu.memory_space<vmem>>, %arg11: memref<2x8x128xf32, #tpu.memory_space<vmem>>, %arg12: memref<2x8x128xf32, #tpu.memory_space<vmem>>) attributes {dimension_semantics = [#tpu.dimension_semantics<parallel>, #tpu.dimension_semantics<arbitrary>], iteration_bounds = array<i64: 1, 1>, scalar_prefetch = 0 : i64, scratch_operands = 3 : i64, tpu.core_type = #tpu.core_type<tc>, window_params = [{transform_indices = @transform_0, window_bounds = array<i64: 2, 4, 128>}, {pipeline_mode = #tpu.pipeline_mode<synchronous>, transform_indices = @transform_1, window_bounds = array<i64: 32, 32>}, {pipeline_mode = #tpu.pipeline_mode<synchronous>, transform_indices = @transform_2, window_bounds = array<i64: 32, 32>}, {pipeline_mode = #tpu.pipeline_mode<synchronous>, transform_indices = @transform_3, window_bounds = array<i64: 32, 32>}, {pipeline_mode = #tpu.pipeline_mode<synchronous>, transform_indices = @transform_4, window_bounds = array<i64: 1, 32>}, {pipeline_mode = #tpu.pipeline_mode<synchronous>, transform_indices = @transform_5, window_bounds = array<i64: 32, 128>}, {pipeline_mode = #tpu.pipeline_mode<synchronous>, transform_indices = @transform_6, window_bounds = array<i64: 1, 128>}, {transform_indices = @transform_7, window_bounds = array<i64: 2, 128>}]} {
    %c0_i32 = arith.constant 0 : i32
    %0 = arith.cmpi eq, %arg1, %c0_i32 : i32
    %1 = arith.extui %0 : i1 to i32
    %c0_i32_0 = arith.constant 0 : i32
    %2 = arith.cmpi ne, %1, %c0_i32_0 : i32
    scf.if %2 {
      %cst = arith.constant 0.000000e+00 : f32
      %16 = vector.broadcast %cst : f32 to vector<2x8x128xf32>
      %c0_23 = arith.constant 0 : index
      %c0_24 = arith.constant 0 : index
      %c0_25 = arith.constant 0 : index
      %17 = vector.load %arg10[%c0_23, %c0_24, %c0_25] : memref<2x8x128xf32, #tpu.memory_space<vmem>>, vector<2x8x128xf32>
      tpu.vector_store %arg10[%c0_23, %c0_24, %c0_25], %16 {strides = array<i32>} : memref<2x8x128xf32, #tpu.memory_space<vmem>>, vector<2x8x128xf32>,
      %cst_26 = arith.constant 0xFF800000 : f32
      %18 = vector.broadcast %cst_26 : f32 to vector<2x8x128xf32>
      %c0_27 = arith.constant 0 : index
      %c0_28 = arith.constant 0 : index
      %c0_29 = arith.constant 0 : index
      %19 = vector.load %arg11[%c0_27, %c0_28, %c0_29] : memref<2x8x128xf32, #tpu.memory_space<vmem>>, vector<2x8x128xf32>
      tpu.vector_store %arg11[%c0_27, %c0_28, %c0_29], %18 {strides = array<i32>} : memref<2x8x128xf32, #tpu.memory_space<vmem>>, vector<2x8x128xf32>,
      %cst_30 = arith.constant 0x7F800000 : f32
      %20 = vector.broadcast %cst_30 : f32 to vector<2x8x128xf32>
      %c0_31 = arith.constant 0 : index
      %c0_32 = arith.constant 0 : index
      %c0_33 = arith.constant 0 : index
      %21 = vector.load %arg12[%c0_31, %c0_32, %c0_33] : memref<2x8x128xf32, #tpu.memory_space<vmem>>, vector<2x8x128xf32>
      tpu.vector_store %arg12[%c0_31, %c0_32, %c0_33], %20 {strides = array<i32>} : memref<2x8x128xf32, #tpu.memory_space<vmem>>, vector<2x8x128xf32>,
    } else {
    }
    %c0 = arith.constant 0 : index
    %c0_1 = arith.constant 0 : index
    %c0_2 = arith.constant 0 : index
    %3 = vector.load %arg2[%c0, %c0_1, %c0_2] : memref<2x4x128xf32, #tpu.memory_space<vmem>>, vector<2x4x128xf32>
    %c0_3 = arith.constant 0 : index
    %c0_4 = arith.constant 0 : index
    %c0_5 = arith.constant 0 : index
    %4 = vector.load %arg10[%c0_3, %c0_4, %c0_5] : memref<2x8x128xf32, #tpu.memory_space<vmem>>, vector<2x4x128xf32>
    %5 = arith.addf %4, %3 : vector<2x4x128xf32>
    %c0_6 = arith.constant 0 : index
    %c0_7 = arith.constant 0 : index
    %c0_8 = arith.constant 0 : index
    %6 = vector.load %arg10[%c0_6, %c0_7, %c0_8] : memref<2x8x128xf32, #tpu.memory_space<vmem>>, vector<2x4x128xf32>
    tpu.vector_store %arg10[%c0_6, %c0_7, %c0_8], %5 {strides = array<i32>} : memref<2x8x128xf32, #tpu.memory_space<vmem>>, vector<2x4x128xf32>,
    %c0_9 = arith.constant 0 : index
    %c0_10 = arith.constant 0 : index
    %c0_11 = arith.constant 0 : index
    %7 = vector.load %arg11[%c0_9, %c0_10, %c0_11] : memref<2x8x128xf32, #tpu.memory_space<vmem>>, vector<2x4x128xf32>
    %8 = arith.maximumf %7, %3 : vector<2x4x128xf32>
    %c0_12 = arith.constant 0 : index
    %c0_13 = arith.constant 0 : index
    %c0_14 = arith.constant 0 : index
    %9 = vector.load %arg11[%c0_12, %c0_13, %c0_14] : memref<2x8x128xf32, #tpu.memory_space<vmem>>, vector<2x4x128xf32>
    tpu.vector_store %arg11[%c0_12, %c0_13, %c0_14], %8 {strides = array<i32>} : memref<2x8x128xf32, #tpu.memory_space<vmem>>, vector<2x4x128xf32>,
    %c0_15 = arith.constant 0 : index
    %c0_16 = arith.constant 0 : index
    %c0_17 = arith.constant 0 : index
    %10 = vector.load %arg12[%c0_15, %c0_16, %c0_17] : memref<2x8x128xf32, #tpu.memory_space<vmem>>, vector<2x4x128xf32>
    %11 = arith.minimumf %10, %3 : vector<2x4x128xf32>
    %c0_18 = arith.constant 0 : index
    %c0_19 = arith.constant 0 : index
    %c0_20 = arith.constant 0 : index
    %12 = vector.load %arg12[%c0_18, %c0_19, %c0_20] : memref<2x8x128xf32, #tpu.memory_space<vmem>>, vector<2x4x128xf32>
    tpu.vector_store %arg12[%c0_18, %c0_19, %c0_20], %11 {strides = array<i32>} : memref<2x8x128xf32, #tpu.memory_space<vmem>>, vector<2x4x128xf32>,
    %c0_i32_21 = arith.constant 0 : i32
    %13 = arith.cmpi eq, %arg1, %c0_i32_21 : i32
    %14 = arith.extui %13 : i1 to i32
    %c0_i32_22 = arith.constant 0 : i32
    %15 = arith.cmpi ne, %14, %c0_i32_22 : i32
    scf.if %15 {
      %c0_23 = arith.constant 0 : index
      %c0_24 = arith.constant 0 : index
      %c0_25 = arith.constant 0 : index
      %16 = vector.load %arg10[%c0_23, %c0_24, %c0_25] : memref<2x8x128xf32, #tpu.memory_space<vmem>>, vector<2x8x128xf32>
      %cst = arith.constant dense<0.000000e+00> : vector<2x128xf32>
      %17 = vector.multi_reduction <add>, %16, %cst [1] : vector<2x8x128xf32> to vector<2x128xf32>
      %c0_26 = arith.constant 0 : index
      %c0_27 = arith.constant 0 : index
      %c0_28 = arith.constant 0 : index
      %18 = vector.load %arg11[%c0_26, %c0_27, %c0_28] : memref<2x8x128xf32, #tpu.memory_space<vmem>>, vector<2x8x128xf32>
      %cst_29 = arith.constant dense<0xFF800000> : vector<2x128xf32>
      %19 = vector.multi_reduction <maximumf>, %18, %cst_29 [1] : vector<2x8x128xf32> to vector<2x128xf32>
      %c0_30 = arith.constant 0 : index
      %c0_31 = arith.constant 0 : index
      %c0_32 = arith.constant 0 : index
      %20 = vector.load %arg12[%c0_30, %c0_31, %c0_32] : memref<2x8x128xf32, #tpu.memory_space<vmem>>, vector<2x8x128xf32>
      %cst_33 = arith.constant dense<0x7F800000> : vector<2x128xf32>
      %21 = vector.multi_reduction <minimumf>, %20, %cst_33 [1] : vector<2x8x128xf32> to vector<2x128xf32>
      %22 = vector.extract_strided_slice %17 {offsets = [0, 0], sizes = [2, 32], strides = [1, 1]} : vector<2x128xf32> to vector<2x32xf32>
      %23 = vector.extract_strided_slice %17 {offsets = [0, 32], sizes = [2, 32], strides = [1, 1]} : vector<2x128xf32> to vector<2x32xf32>
      %24 = arith.addf %22, %23 : vector<2x32xf32>
      %25 = vector.extract_strided_slice %17 {offsets = [0, 64], sizes = [2, 32], strides = [1, 1]} : vector<2x128xf32> to vector<2x32xf32>
      %26 = arith.addf %24, %25 : vector<2x32xf32>
      %27 = vector.extract_strided_slice %17 {offsets = [0, 96], sizes = [2, 32], strides = [1, 1]} : vector<2x128xf32> to vector<2x32xf32>
      %28 = arith.addf %26, %27 : vector<2x32xf32>
      %cst_34 = arith.constant 6.250000e-02 : f32
      %29 = vector.broadcast %cst_34 : f32 to vector<2x32xf32>
      %30 = arith.mulf %28, %29 : vector<2x32xf32>
      %31 = vector.extract_strided_slice %19 {offsets = [0, 0], sizes = [2, 32], strides = [1, 1]} : vector<2x128xf32> to vector<2x32xf32>
      %32 = vector.extract_strided_slice %19 {offsets = [0, 32], sizes = [2, 32], strides = [1, 1]} : vector<2x128xf32> to vector<2x32xf32>
      %33 = arith.maximumf %31, %32 : vector<2x32xf32>
      %34 = vector.extract_strided_slice %19 {offsets = [0, 64], sizes = [2, 32], strides = [1, 1]} : vector<2x128xf32> to vector<2x32xf32>
      %35 = arith.maximumf %33, %34 : vector<2x32xf32>
      %36 = vector.extract_strided_slice %19 {offsets = [0, 96], sizes = [2, 32], strides = [1, 1]} : vector<2x128xf32> to vector<2x32xf32>
      %37 = arith.maximumf %35, %36 : vector<2x32xf32>
      %38 = vector.extract_strided_slice %21 {offsets = [0, 0], sizes = [2, 32], strides = [1, 1]} : vector<2x128xf32> to vector<2x32xf32>
      %39 = vector.extract_strided_slice %21 {offsets = [0, 32], sizes = [2, 32], strides = [1, 1]} : vector<2x128xf32> to vector<2x32xf32>
      %40 = arith.minimumf %38, %39 : vector<2x32xf32>
      %41 = vector.extract_strided_slice %21 {offsets = [0, 64], sizes = [2, 32], strides = [1, 1]} : vector<2x128xf32> to vector<2x32xf32>
      %42 = arith.minimumf %40, %41 : vector<2x32xf32>
      %43 = vector.extract_strided_slice %21 {offsets = [0, 96], sizes = [2, 32], strides = [1, 1]} : vector<2x128xf32> to vector<2x32xf32>
      %44 = arith.minimumf %42, %43 : vector<2x32xf32>
      %c0_35 = arith.constant 0 : index
      %c0_36 = arith.constant 0 : index
      %45 = vector.load %arg3[%c0_35, %c0_36] : memref<32x32xf32, #tpu.memory_space<vmem>>, vector<32x32xf32>
      %cst_37 = arith.constant dense<0.000000e+00> : vector<2x32xf32>
      %46 = tpu.matmul %30, %45, %cst_37 {dimension_numbers = #tpu.dot_dimension_numbers<[1], [0], [0], [1], [0, 0, 1, 1], [], []>} : vector<2x32xf32>, vector<32x32xf32>, vector<2x32xf32> -> vector<2x32xf32>
      %c0_38 = arith.constant 0 : index
      %c0_39 = arith.constant 0 : index
      %47 = vector.load %arg4[%c0_38, %c0_39] : memref<32x32xf32, #tpu.memory_space<vmem>>, vector<32x32xf32>
      %cst_40 = arith.constant dense<0.000000e+00> : vector<2x32xf32>
      %48 = tpu.matmul %37, %47, %cst_40 {dimension_numbers = #tpu.dot_dimension_numbers<[1], [0], [0], [1], [0, 0, 1, 1], [], []>} : vector<2x32xf32>, vector<32x32xf32>, vector<2x32xf32> -> vector<2x32xf32>
      %49 = arith.addf %46, %48 : vector<2x32xf32>
      %c0_41 = arith.constant 0 : index
      %c0_42 = arith.constant 0 : index
      %50 = vector.load %arg5[%c0_41, %c0_42] : memref<32x32xf32, #tpu.memory_space<vmem>>, vector<32x32xf32>
      %cst_43 = arith.constant dense<0.000000e+00> : vector<2x32xf32>
      %51 = tpu.matmul %44, %50, %cst_43 {dimension_numbers = #tpu.dot_dimension_numbers<[1], [0], [0], [1], [0, 0, 1, 1], [], []>} : vector<2x32xf32>, vector<32x32xf32>, vector<2x32xf32> -> vector<2x32xf32>
      %52 = arith.addf %49, %51 : vector<2x32xf32>
      %c0_44 = arith.constant 0 : index
      %c0_45 = arith.constant 0 : index
      %53 = vector.load %arg6[%c0_44, %c0_45] : memref<1x32xf32, #tpu.memory_space<vmem>>, vector<1x32xf32>
      %54 = vector.broadcast %53 : vector<1x32xf32> to vector<2x32xf32>
      %55 = arith.addf %52, %54 : vector<2x32xf32>
      %cst_46 = arith.constant 0.000000e+00 : f32
      %56 = vector.broadcast %cst_46 : f32 to vector<2x32xf32>
      %57 = arith.maximumf %55, %56 : vector<2x32xf32>
      %c0_47 = arith.constant 0 : index
      %c0_48 = arith.constant 0 : index
      %58 = vector.load %arg7[%c0_47, %c0_48] : memref<32x128xf32, #tpu.memory_space<vmem>>, vector<32x128xf32>
      %cst_49 = arith.constant dense<0.000000e+00> : vector<2x128xf32>
      %59 = tpu.matmul %57, %58, %cst_49 {dimension_numbers = #tpu.dot_dimension_numbers<[1], [0], [0], [1], [0, 0, 1, 1], [], []>} : vector<2x32xf32>, vector<32x128xf32>, vector<2x128xf32> -> vector<2x128xf32>
      %c0_50 = arith.constant 0 : index
      %c0_51 = arith.constant 0 : index
      %60 = vector.load %arg8[%c0_50, %c0_51] : memref<1x128xf32, #tpu.memory_space<vmem>>, vector<1x128xf32>
      %61 = vector.broadcast %60 : vector<1x128xf32> to vector<2x128xf32>
      %62 = arith.addf %59, %61 : vector<2x128xf32>
      %c0_52 = arith.constant 0 : index
      %c0_53 = arith.constant 0 : index
      %63 = vector.load %arg9[%c0_52, %c0_53] : memref<2x128xf32, #tpu.memory_space<vmem>>, vector<2x128xf32>
      tpu.vector_store %arg9[%c0_52, %c0_53], %62 {strides = array<i32>} : memref<2x128xf32, #tpu.memory_space<vmem>>, vector<2x128xf32>,
    } else {
    }
    return
  }
  func.func @transform_0(%arg0: i32, %arg1: i32) -> (i32, i32, i32) {
    %c0_i32 = arith.constant 0 : i32
    %c0_i32_0 = arith.constant 0 : i32
    return %arg0, %arg1, %c0_i32 : i32, i32, i32
  }
  func.func @transform_1(%arg0: i32, %arg1: i32) -> (i32, i32) {
    %c0_i32 = arith.constant 0 : i32
    %c0_i32_0 = arith.constant 0 : i32
    %c0_i32_1 = arith.constant 0 : i32
    return %c0_i32, %c0_i32_0 : i32, i32
  }
  func.func @transform_2(%arg0: i32, %arg1: i32) -> (i32, i32) {
    %c0_i32 = arith.constant 0 : i32
    %c0_i32_0 = arith.constant 0 : i32
    %c0_i32_1 = arith.constant 0 : i32
    return %c0_i32, %c0_i32_0 : i32, i32
  }
  func.func @transform_3(%arg0: i32, %arg1: i32) -> (i32, i32) {
    %c0_i32 = arith.constant 0 : i32
    %c0_i32_0 = arith.constant 0 : i32
    %c0_i32_1 = arith.constant 0 : i32
    return %c0_i32, %c0_i32_0 : i32, i32
  }
  func.func @transform_4(%arg0: i32, %arg1: i32) -> (i32, i32) {
    %c0_i32 = arith.constant 0 : i32
    %c0_i32_0 = arith.constant 0 : i32
    %c0_i32_1 = arith.constant 0 : i32
    return %c0_i32, %c0_i32_0 : i32, i32
  }
  func.func @transform_5(%arg0: i32, %arg1: i32) -> (i32, i32) {
    %c0_i32 = arith.constant 0 : i32
    %c0_i32_0 = arith.constant 0 : i32
    %c0_i32_1 = arith.constant 0 : i32
    return %c0_i32, %c0_i32_0 : i32, i32
  }
  func.func @transform_6(%arg0: i32, %arg1: i32) -> (i32, i32) {
    %c0_i32 = arith.constant 0 : i32
    %c0_i32_0 = arith.constant 0 : i32
    %c0_i32_1 = arith.constant 0 : i32
    return %c0_i32, %c0_i32_0 : i32, i32
  }
  func.func @transform_7(%arg0: i32, %arg1: i32) -> (i32, i32) {
    %c0_i32 = arith.constant 0 : i32
    %c0_i32_0 = arith.constant 0 : i32
    return %arg0, %c0_i32 : i32, i32
  }
}

module attributes {stable_mosaic.version = 11 : i64} {
  func.func @spiral_reader_kernel(%arg0: i32, %arg1: i32, %arg2: memref<2x4x128xf32, #tpu.memory_space<vmem>>, %arg3: memref<32x32xf32, #tpu.memory_space<vmem>>, %arg4: memref<32x32xf32, #tpu.memory_space<vmem>>, %arg5: memref<32x32xf32, #tpu.memory_space<vmem>>, %arg6: memref<1x32xf32, #tpu.memory_space<vmem>>, %arg7: memref<32x128xf32, #tpu.memory_space<vmem>>, %arg8: memref<1x128xf32, #tpu.memory_space<vmem>>, %arg9: memref<2x128xf32, #tpu.memory_space<vmem>>, %arg10: memref<2x8x128xf32, #tpu.memory_space<vmem>>, %arg11: memref<2x8x128xf32, #tpu.memory_space<vmem>>, %arg12: memref<2x8x128xf32, #tpu.memory_space<vmem>>) attributes {dimension_semantics = [#tpu.dimension_semantics<parallel>, #tpu.dimension_semantics<arbitrary>], iteration_bounds = array<i64: 1, 1>, scalar_prefetch = 0 : i64, scratch_operands = 3 : i64, tpu.core_type = #tpu.core_type<tc>, window_params = [{transform_indices = @transform_0, window_bounds = array<i64: 2, 4, 128>}, {pipeline_mode = #tpu.pipeline_mode<synchronous>, transform_indices = @transform_1, window_bounds = array<i64: 32, 32>}, {pipeline_mode = #tpu.pipeline_mode<synchronous>, transform_indices = @transform_2, window_bounds = array<i64: 32, 32>}, {pipeline_mode = #tpu.pipeline_mode<synchronous>, transform_indices = @transform_3, window_bounds = array<i64: 32, 32>}, {pipeline_mode = #tpu.pipeline_mode<synchronous>, transform_indices = @transform_4, window_bounds = array<i64: 1, 32>}, {pipeline_mode = #tpu.pipeline_mode<synchronous>, transform_indices = @transform_5, window_bounds = array<i64: 32, 128>}, {pipeline_mode = #tpu.pipeline_mode<synchronous>, transform_indices = @transform_6, window_bounds = array<i64: 1, 128>}, {transform_indices = @transform_7, window_bounds = array<i64: 2, 128>}]} {
    %c0_i32 = arith.constant 0 : i32
    %0 = arith.cmpi eq, %arg1, %c0_i32 : i32
    %1 = arith.extui %0 : i1 to i32
    %c0_i32_0 = arith.constant 0 : i32
    %2 = arith.cmpi ne, %1, %c0_i32_0 : i32
    scf.if %2 {
      %cst = arith.constant 0.000000e+00 : f32
      %16 = vector.broadcast %cst : f32 to vector<2x8x128xf32>
      %c0_23 = arith.constant 0 : index
      %c0_24 = arith.constant 0 : index
      %c0_25 = arith.constant 0 : index
      %17 = vector.load %arg10[%c0_23, %c0_24, %c0_25] : memref<2x8x128xf32, #tpu.memory_space<vmem>>, vector<2x8x128xf32>
      tpu.vector_store %arg10[%c0_23, %c0_24, %c0_25], %16 {strides = array<i32>} : memref<2x8x128xf32, #tpu.memory_space<vmem>>, vector<2x8x128xf32>,
      %cst_26 = arith.constant 0xFF800000 : f32
      %18 = vector.broadcast %cst_26 : f32 to vector<2x8x128xf32>
      %c0_27 = arith.constant 0 : index
      %c0_28 = arith.constant 0 : index
      %c0_29 = arith.constant 0 : index
      %19 = vector.load %arg11[%c0_27, %c0_28, %c0_29] : memref<2x8x128xf32, #tpu.memory_space<vmem>>, vector<2x8x128xf32>
      tpu.vector_store %arg11[%c0_27, %c0_28, %c0_29], %18 {strides = array<i32>} : memref<2x8x128xf32, #tpu.memory_space<vmem>>, vector<2x8x128xf32>,
      %cst_30 = arith.constant 0x7F800000 : f32
      %20 = vector.broadcast %cst_30 : f32 to vector<2x8x128xf32>
      %c0_31 = arith.constant 0 : index
      %c0_32 = arith.constant 0 : index
      %c0_33 = arith.constant 0 : index
      %21 = vector.load %arg12[%c0_31, %c0_32, %c0_33] : memref<2x8x128xf32, #tpu.memory_space<vmem>>, vector<2x8x128xf32>
      tpu.vector_store %arg12[%c0_31, %c0_32, %c0_33], %20 {strides = array<i32>} : memref<2x8x128xf32, #tpu.memory_space<vmem>>, vector<2x8x128xf32>,
    } else {
    }
    %c0 = arith.constant 0 : index
    %c0_1 = arith.constant 0 : index
    %c0_2 = arith.constant 0 : index
    %3 = vector.load %arg2[%c0, %c0_1, %c0_2] : memref<2x4x128xf32, #tpu.memory_space<vmem>>, vector<2x4x128xf32>
    %c0_3 = arith.constant 0 : index
    %c0_4 = arith.constant 0 : index
    %c0_5 = arith.constant 0 : index
    %4 = vector.load %arg10[%c0_3, %c0_4, %c0_5] : memref<2x8x128xf32, #tpu.memory_space<vmem>>, vector<2x4x128xf32>
    %5 = arith.addf %4, %3 : vector<2x4x128xf32>
    %c0_6 = arith.constant 0 : index
    %c0_7 = arith.constant 0 : index
    %c0_8 = arith.constant 0 : index
    %6 = vector.load %arg10[%c0_6, %c0_7, %c0_8] : memref<2x8x128xf32, #tpu.memory_space<vmem>>, vector<2x4x128xf32>
    tpu.vector_store %arg10[%c0_6, %c0_7, %c0_8], %5 {strides = array<i32>} : memref<2x8x128xf32, #tpu.memory_space<vmem>>, vector<2x4x128xf32>,
    %c0_9 = arith.constant 0 : index
    %c0_10 = arith.constant 0 : index
    %c0_11 = arith.constant 0 : index
    %7 = vector.load %arg11[%c0_9, %c0_10, %c0_11] : memref<2x8x128xf32, #tpu.memory_space<vmem>>, vector<2x4x128xf32>
    %8 = arith.maximumf %7, %3 : vector<2x4x128xf32>
    %c0_12 = arith.constant 0 : index
    %c0_13 = arith.constant 0 : index
    %c0_14 = arith.constant 0 : index
    %9 = vector.load %arg11[%c0_12, %c0_13, %c0_14] : memref<2x8x128xf32, #tpu.memory_space<vmem>>, vector<2x4x128xf32>
    tpu.vector_store %arg11[%c0_12, %c0_13, %c0_14], %8 {strides = array<i32>} : memref<2x8x128xf32, #tpu.memory_space<vmem>>, vector<2x4x128xf32>,
    %c0_15 = arith.constant 0 : index
    %c0_16 = arith.constant 0 : index
    %c0_17 = arith.constant 0 : index
    %10 = vector.load %arg12[%c0_15, %c0_16, %c0_17] : memref<2x8x128xf32, #tpu.memory_space<vmem>>, vector<2x4x128xf32>
    %11 = arith.minimumf %10, %3 : vector<2x4x128xf32>
    %c0_18 = arith.constant 0 : index
    %c0_19 = arith.constant 0 : index
    %c0_20 = arith.constant 0 : index
    %12 = vector.load %arg12[%c0_18, %c0_19, %c0_20] : memref<2x8x128xf32, #tpu.memory_space<vmem>>, vector<2x4x128xf32>
    tpu.vector_store %arg12[%c0_18, %c0_19, %c0_20], %11 {strides = array<i32>} : memref<2x8x128xf32, #tpu.memory_space<vmem>>, vector<2x4x128xf32>,
    %c0_i32_21 = arith.constant 0 : i32
    %13 = arith.cmpi eq, %arg1, %c0_i32_21 : i32
    %14 = arith.extui %13 : i1 to i32
    %c0_i32_22 = arith.constant 0 : i32
    %15 = arith.cmpi ne, %14, %c0_i32_22 : i32
    scf.if %15 {
      %c0_23 = arith.constant 0 : index
      %c0_24 = arith.constant 0 : index
      %c0_25 = arith.constant 0 : index
      %16 = vector.load %arg10[%c0_23, %c0_24, %c0_25] : memref<2x8x128xf32, #tpu.memory_space<vmem>>, vector<2x8x128xf32>
      %cst = arith.constant dense<0.000000e+00> : vector<2x128xf32>
      %17 = vector.multi_reduction <add>, %16, %cst [1] : vector<2x8x128xf32> to vector<2x128xf32>
      %c0_26 = arith.constant 0 : index
      %c0_27 = arith.constant 0 : index
      %c0_28 = arith.constant 0 : index
      %18 = vector.load %arg11[%c0_26, %c0_27, %c0_28] : memref<2x8x128xf32, #tpu.memory_space<vmem>>, vector<2x8x128xf32>
      %cst_29 = arith.constant dense<0xFF800000> : vector<2x128xf32>
      %19 = vector.multi_reduction <maximumf>, %18, %cst_29 [1] : vector<2x8x128xf32> to vector<2x128xf32>
      %c0_30 = arith.constant 0 : index
      %c0_31 = arith.constant 0 : index
      %c0_32 = arith.constant 0 : index
      %20 = vector.load %arg12[%c0_30, %c0_31, %c0_32] : memref<2x8x128xf32, #tpu.memory_space<vmem>>, vector<2x8x128xf32>
      %cst_33 = arith.constant dense<0x7F800000> : vector<2x128xf32>
      %21 = vector.multi_reduction <minimumf>, %20, %cst_33 [1] : vector<2x8x128xf32> to vector<2x128xf32>
      %22 = vector.extract_strided_slice %17 {offsets = [0, 0], sizes = [2, 32], strides = [1, 1]} : vector<2x128xf32> to vector<2x32xf32>
      %23 = vector.extract_strided_slice %17 {offsets = [0, 32], sizes = [2, 32], strides = [1, 1]} : vector<2x128xf32> to vector<2x32xf32>
      %24 = arith.addf %22, %23 : vector<2x32xf32>
      %25 = vector.extract_strided_slice %17 {offsets = [0, 64], sizes = [2, 32], strides = [1, 1]} : vector<2x128xf32> to vector<2x32xf32>
      %26 = arith.addf %24, %25 : vector<2x32xf32>
      %27 = vector.extract_strided_slice %17 {offsets = [0, 96], sizes = [2, 32], strides = [1, 1]} : vector<2x128xf32> to vector<2x32xf32>
      %28 = arith.addf %26, %27 : vector<2x32xf32>
      %cst_34 = arith.constant 6.250000e-02 : f32
      %29 = vector.broadcast %cst_34 : f32 to vector<2x32xf32>
      %30 = arith.mulf %28, %29 : vector<2x32xf32>
      %31 = vector.extract_strided_slice %19 {offsets = [0, 0], sizes = [2, 32], strides = [1, 1]} : vector<2x128xf32> to vector<2x32xf32>
      %32 = vector.extract_strided_slice %19 {offsets = [0, 32], sizes = [2, 32], strides = [1, 1]} : vector<2x128xf32> to vector<2x32xf32>
      %33 = arith.maximumf %31, %32 : vector<2x32xf32>
      %34 = vector.extract_strided_slice %19 {offsets = [0, 64], sizes = [2, 32], strides = [1, 1]} : vector<2x128xf32> to vector<2x32xf32>
      %35 = arith.maximumf %33, %34 : vector<2x32xf32>
      %36 = vector.extract_strided_slice %19 {offsets = [0, 96], sizes = [2, 32], strides = [1, 1]} : vector<2x128xf32> to vector<2x32xf32>
      %37 = arith.maximumf %35, %36 : vector<2x32xf32>
      %38 = vector.extract_strided_slice %21 {offsets = [0, 0], sizes = [2, 32], strides = [1, 1]} : vector<2x128xf32> to vector<2x32xf32>
      %39 = vector.extract_strided_slice %21 {offsets = [0, 32], sizes = [2, 32], strides = [1, 1]} : vector<2x128xf32> to vector<2x32xf32>
      %40 = arith.minimumf %38, %39 : vector<2x32xf32>
      %41 = vector.extract_strided_slice %21 {offsets = [0, 64], sizes = [2, 32], strides = [1, 1]} : vector<2x128xf32> to vector<2x32xf32>
      %42 = arith.minimumf %40, %41 : vector<2x32xf32>
      %43 = vector.extract_strided_slice %21 {offsets = [0, 96], sizes = [2, 32], strides = [1, 1]} : vector<2x128xf32> to vector<2x32xf32>
      %44 = arith.minimumf %42, %43 : vector<2x32xf32>
      %c0_35 = arith.constant 0 : index
      %c0_36 = arith.constant 0 : index
      %45 = vector.load %arg3[%c0_35, %c0_36] : memref<32x32xf32, #tpu.memory_space<vmem>>, vector<32x32xf32>
      %cst_37 = arith.constant dense<0.000000e+00> : vector<2x32xf32>
      %46 = tpu.matmul %30, %45, %cst_37 {dimension_numbers = #tpu.dot_dimension_numbers<[1], [0], [0], [1], [0, 0, 1, 1], [], []>} : vector<2x32xf32>, vector<32x32xf32>, vector<2x32xf32> -> vector<2x32xf32>
      %c0_38 = arith.constant 0 : index
      %c0_39 = arith.constant 0 : index
      %47 = vector.load %arg4[%c0_38, %c0_39] : memref<32x32xf32, #tpu.memory_space<vmem>>, vector<32x32xf32>
      %cst_40 = arith.constant dense<0.000000e+00> : vector<2x32xf32>
      %48 = tpu.matmul %37, %47, %cst_40 {dimension_numbers = #tpu.dot_dimension_numbers<[1], [0], [0], [1], [0, 0, 1, 1], [], []>} : vector<2x32xf32>, vector<32x32xf32>, vector<2x32xf32> -> vector<2x32xf32>
      %49 = arith.addf %46, %48 : vector<2x32xf32>
      %c0_41 = arith.constant 0 : index
      %c0_42 = arith.constant 0 : index
      %50 = vector.load %arg5[%c0_41, %c0_42] : memref<32x32xf32, #tpu.memory_space<vmem>>, vector<32x32xf32>
      %cst_43 = arith.constant dense<0.000000e+00> : vector<2x32xf32>
      %51 = tpu.matmul %44, %50, %cst_43 {dimension_numbers = #tpu.dot_dimension_numbers<[1], [0], [0], [1], [0, 0, 1, 1], [], []>} : vector<2x32xf32>, vector<32x32xf32>, vector<2x32xf32> -> vector<2x32xf32>
      %52 = arith.addf %49, %51 : vector<2x32xf32>
      %c0_44 = arith.constant 0 : index
      %c0_45 = arith.constant 0 : index
      %53 = vector.load %arg6[%c0_44, %c0_45] : memref<1x32xf32, #tpu.memory_space<vmem>>, vector<1x32xf32>
      %54 = vector.broadcast %53 : vector<1x32xf32> to vector<2x32xf32>
      %55 = arith.addf %52, %54 : vector<2x32xf32>
      %cst_46 = arith.constant 0.000000e+00 : f32
      %56 = vector.broadcast %cst_46 : f32 to vector<2x32xf32>
      %57 = arith.maximumf %55, %56 : vector<2x32xf32>
      %c0_47 = arith.constant 0 : index
      %c0_48 = arith.constant 0 : index
      %58 = vector.load %arg7[%c0_47, %c0_48] : memref<32x128xf32, #tpu.memory_space<vmem>>, vector<32x128xf32>
      %cst_49 = arith.constant dense<0.000000e+00> : vector<2x128xf32>
      %59 = tpu.matmul %57, %58, %cst_49 {dimension_numbers = #tpu.dot_dimension_numbers<[1], [0], [0], [1], [0, 0, 1, 1], [], []>} : vector<2x32xf32>, vector<32x128xf32>, vector<2x128xf32> -> vector<2x128xf32>
      %c0_50 = arith.constant 0 : index
      %c0_51 = arith.constant 0 : index
      %60 = vector.load %arg8[%c0_50, %c0_51] : memref<1x128xf32, #tpu.memory_space<vmem>>, vector<1x128xf32>
      %61 = vector.broadcast %60 : vector<1x128xf32> to vector<2x128xf32>
      %62 = arith.addf %59, %61 : vector<2x128xf32>
      %c0_52 = arith.constant 0 : index
      %c0_53 = arith.constant 0 : index
      %63 = vector.load %arg9[%c0_52, %c0_53] : memref<2x128xf32, #tpu.memory_space<vmem>>, vector<2x128xf32>
      tpu.vector_store %arg9[%c0_52, %c0_53], %62 {strides = array<i32>} : memref<2x128xf32, #tpu.memory_space<vmem>>, vector<2x128xf32>,
    } else {
    }
    return
  }
  func.func @transform_0(%arg0: i32, %arg1: i32) -> (i32, i32, i32) {
    %c0_i32 = arith.constant 0 : i32
    %c0_i32_0 = arith.constant 0 : i32
    return %arg0, %arg1, %c0_i32 : i32, i32, i32
  }
  func.func @transform_1(%arg0: i32, %arg1: i32) -> (i32, i32) {
    %c0_i32 = arith.constant 0 : i32
    %c0_i32_0 = arith.constant 0 : i32
    %c0_i32_1 = arith.constant 0 : i32
    return %c0_i32, %c0_i32_0 : i32, i32
  }
  func.func @transform_2(%arg0: i32, %arg1: i32) -> (i32, i32) {
    %c0_i32 = arith.constant 0 : i32
    %c0_i32_0 = arith.constant 0 : i32
    %c0_i32_1 = arith.constant 0 : i32
    return %c0_i32, %c0_i32_0 : i32, i32
  }
  func.func @transform_3(%arg0: i32, %arg1: i32) -> (i32, i32) {
    %c0_i32 = arith.constant 0 : i32
    %c0_i32_0 = arith.constant 0 : i32
    %c0_i32_1 = arith.constant 0 : i32
    return %c0_i32, %c0_i32_0 : i32, i32
  }
  func.func @transform_4(%arg0: i32, %arg1: i32) -> (i32, i32) {
    %c0_i32 = arith.constant 0 : i32
    %c0_i32_0 = arith.constant 0 : i32
    %c0_i32_1 = arith.constant 0 : i32
    return %c0_i32, %c0_i32_0 : i32, i32
  }
  func.func @transform_5(%arg0: i32, %arg1: i32) -> (i32, i32) {
    %c0_i32 = arith.constant 0 : i32
    %c0_i32_0 = arith.constant 0 : i32
    %c0_i32_1 = arith.constant 0 : i32
    return %c0_i32, %c0_i32_0 : i32, i32
  }
  func.func @transform_6(%arg0: i32, %arg1: i32) -> (i32, i32) {
    %c0_i32 = arith.constant 0 : i32
    %c0_i32_0 = arith.constant 0 : i32
    %c0_i32_1 = arith.constant 0 : i32
    return %c0_i32, %c0_i32_0 : i32, i32
  }
  func.func @transform_7(%arg0: i32, %arg1: i32) -> (i32, i32) {
    %c0_i32 = arith.constant 0 : i32
    %c0_i32_0 = arith.constant 0 : i32
    return %arg0, %c0_i32 : i32, i32
  }
}

</mosaic_0001>

<llo_original>
// kernel: tpu_custom_call.1
$region0: #{tpu_custom_call.1}
  #allocation0 [shape = 'u32[]', space=smem, size = 0x4, offset = 0x4, fixed_abs, tag = 'smem constant byte address 0x4 - core index']
  #allocation1 [shape = 'u32[72,128]{1,0:T(1,128)}', space=vmem, size = 0x9000, scoped, tag = 'internal scratch']
  #allocation2 [shape = 'f32[2,8,128]{2,1,0:T(8,128)}', space=vmem, size = 0x2000, scoped, tag = 'scratch operand']
  #allocation3 [shape = 'f32[2,8,128]{2,1,0:T(8,128)}', space=vmem, size = 0x2000, scoped, tag = 'scratch operand']
  #allocation4 [shape = 'f32[2,8,128]{2,1,0:T(8,128)}', space=vmem, size = 0x2000, scoped, tag = 'scratch operand']
  %s0 = inlined_call_operand.hbm [shape: f32[2,4,128], index: 0, kind: input, shape index: {}]
  %s1 = inlined_call_operand.hbm [shape: f32[32,32], index: 1, kind: input, shape index: {}]
  %s2 = inlined_call_operand.hbm [shape: f32[32,32], index: 2, kind: input, shape index: {}]
  %s3 = inlined_call_operand.hbm [shape: f32[32,32], index: 3, kind: input, shape index: {}]
  %s4 = inlined_call_operand.vmem [shape: f32[1,32], index: 4, kind: input, shape index: {}]
  %s5 = inlined_call_operand.hbm [shape: f32[32,128], index: 5, kind: input, shape index: {}]
  %s6 = inlined_call_operand.vmem [shape: f32[1,128], index: 6, kind: input, shape index: {}]
  %s7 = inlined_call_operand.hbm [shape: f32[2,128], index: 7, kind: output, shape index: {}]
  %s8 = sld [smem:[#allocation0]]
  $region66: #{tpu_custom_call.1} parent=0
    _
  %s10 = ssub.s32 1, %s8
  %s11 = scalar_select 0, %s10, %s8
  $region1: #{tpu_custom_call.1} parent=0
    #allocation5 [shape = 'u8[4096]{0}', space=vmem, size = 0x1000, scoped, tag = 'input window, operand 0, single buffered']
    #allocation6 [shape = 's32[1]{0}', space=sflag, size = 0x4, scoped, tag = 'scoped memory for tpu_custom_call.1']
    #allocation7 [shape = 's32[1]{0}', space=sflag, size = 0x4, scoped, tag = 'scoped memory for tpu_custom_call.1']
    #allocation8 [shape = 'u8[16384]{0}', space=vmem, size = 0x4000, scoped, tag = 'input window, operand 1, single buffered']
    #allocation9 [shape = 's32[1]{0}', space=sflag, size = 0x4, scoped, tag = 'scoped memory for tpu_custom_call.1']
    #allocation10 [shape = 'u8[16384]{0}', space=vmem, size = 0x4000, scoped, tag = 'input window, operand 2, single buffered']
    #allocation11 [shape = 'u8[16384]{0}', space=vmem, size = 0x4000, scoped, tag = 'input window, operand 3, single buffered']
    #allocation12 [shape = 's32[1]{0}', space=sflag, size = 0x4, scoped, tag = 'scoped memory for tpu_custom_call.1']
    #allocation13 [shape = 'u8[16384]{0}', space=vmem, size = 0x4000, scoped, tag = 'input window, operand 5, single buffered']
    #allocation14 [shape = 'u8[1024]{0}', space=vmem, size = 0x400, scoped, tag = 'output window, operand 0, single buffered']
    %12 = vsyncpa [#allocation6], 0
    %13 = vsyncpa [#allocation9], 0
    %14 = vsyncpa [#allocation12], 0
    %15 = vsyncpa [#allocation7], 0
    // Predicated region
    $region2: #{tpu_custom_call.1} parent=1 // pred_check
      _
    $region3: #{tpu_custom_call.1} parent=1 // pred_check_branch
      %17 = sbr.rel (0) target = $region5
    $region4: #{tpu_custom_call.1} parent=1 // pred_region
      %19 = vsyncadd [#allocation6], 0
      %s20 = sshll.u32 %s0, 4
      %s21 = int_to_ptr.hbm [resolvable:$true] %s20
      %s22 = sshll.u32 [#allocation5], 4
      %s23 = int_to_ptr.vmem [resolvable:$true] %s22
      %28 = dma.hbm_to_vmem [thread:$0]  %s21, 128, %s23, [#allocation6], 64, 64, 4
    $region5: #{tpu_custom_call.1} parent=1 // pred_fallthru
      _
    // Predicated region
    $region6: #{tpu_custom_call.1} parent=1 // pred_check
      _
    $region7: #{tpu_custom_call.1} parent=1 // pred_check_branch
      %30 = sbr.rel (0) target = $region9
    $region8: #{tpu_custom_call.1} parent=1 // pred_region
      %32 = vsyncadd [#allocation9], 0
      %s33 = sshll.u32 %s1, 4
      %s34 = int_to_ptr.hbm [resolvable:$true] %s33
      %s35 = sshll.u32 [#allocation8], 4
      %s36 = int_to_ptr.vmem [resolvable:$true] %s35
      %41 = dma.hbm_to_vmem [thread:$0]  %s34, 512, %s36, [#allocation9], 128, 128, 8
    $region9: #{tpu_custom_call.1} parent=1 // pred_fallthru
      _
    // Predicated region
    $region10: #{tpu_custom_call.1} parent=1 // pred_check
      _
    $region11: #{tpu_custom_call.1} parent=1 // pred_check_branch
      %43 = sbr.rel (0) target = $region13
    $region12: #{tpu_custom_call.1} parent=1 // pred_region
      %45 = vsyncadd [#allocation9], 0
      %s46 = sshll.u32 %s2, 4
      %s47 = int_to_ptr.hbm [resolvable:$true] %s46
      %s48 = sshll.u32 [#allocation10], 4
      %s49 = int_to_ptr.vmem [resolvable:$true] %s48
      %54 = dma.hbm_to_vmem [thread:$0]  %s47, 512, %s49, [#allocation9], 128, 128, 8
    $region13: #{tpu_custom_call.1} parent=1 // pred_fallthru
      _
    // Predicated region
    $region14: #{tpu_custom_call.1} parent=1 // pred_check
      _
    $region15: #{tpu_custom_call.1} parent=1 // pred_check_branch
      %56 = sbr.rel (0) target = $region17
    $region16: #{tpu_custom_call.1} parent=1 // pred_region
      %58 = vsyncadd [#allocation12], 0
      %s59 = sshll.u32 %s3, 4
      %s60 = int_to_ptr.hbm [resolvable:$true] %s59
      %s61 = sshll.u32 [#allocation11], 4
      %s62 = int_to_ptr.vmem [resolvable:$true] %s61
      %67 = dma.hbm_to_vmem [thread:$0]  %s60, 512, %s62, [#allocation12], 128, 128, 8
    $region17: #{tpu_custom_call.1} parent=1 // pred_fallthru
      _
    // Predicated region
    $region18: #{tpu_custom_call.1} parent=1 // pred_check
      _
    $region19: #{tpu_custom_call.1} parent=1 // pred_check_branch
      %69 = sbr.rel (0) target = $region21
    $region20: #{tpu_custom_call.1} parent=1 // pred_region
      _
    $region21: #{tpu_custom_call.1} parent=1 // pred_fallthru
      _
    // Predicated region
    $region22: #{tpu_custom_call.1} parent=1 // pred_check
      _
    $region23: #{tpu_custom_call.1} parent=1 // pred_check_branch
      %71 = sbr.rel (0) target = $region25
    $region24: #{tpu_custom_call.1} parent=1 // pred_region
      %73 = vsyncadd [#allocation12], 0
      %s74 = sshll.u32 %s5, 4
      %s75 = int_to_ptr.hbm [resolvable:$true] %s74
      %s76 = sshll.u32 [#allocation13], 4
      %s77 = int_to_ptr.vmem [resolvable:$true] %s76
      %82 = dma.hbm_to_vmem [thread:$0]  %s75, 512, %s77, [#allocation12], 128, 128, 8
    $region25: #{tpu_custom_call.1} parent=1 // pred_fallthru
      _
    // Predicated region
    $region26: #{tpu_custom_call.1} parent=1 // pred_check
      _
    $region27: #{tpu_custom_call.1} parent=1 // pred_check_branch
      %84 = sbr.rel (0) target = $region29
    $region28: #{tpu_custom_call.1} parent=1 // pred_region
      _
    $region29: #{tpu_custom_call.1} parent=1 // pred_fallthru
      _
    // Predicated region
    $region30: #{tpu_custom_call.1} parent=1 // pred_check
      _
    $region31: #{tpu_custom_call.1} parent=1 // pred_check_branch
      %86 = sbr.rel (0) target = $region33
    $region32: #{tpu_custom_call.1} parent=1 // pred_region
      %88 = dma.done [#allocation6], 128
    $region33: #{tpu_custom_call.1} parent=1 // pred_fallthru
      _
    // Predicated region
    $region34: #{tpu_custom_call.1} parent=1 // pred_check
      _
    $region35: #{tpu_custom_call.1} parent=1 // pred_check_branch
      %90 = sbr.rel (0) target = $region37
    $region36: #{tpu_custom_call.1} parent=1 // pred_region
      %92 = dma.done [#allocation9], 512
    $region37: #{tpu_custom_call.1} parent=1 // pred_fallthru
      _
    // Predicated region
    $region38: #{tpu_custom_call.1} parent=1 // pred_check
      _
    $region39: #{tpu_custom_call.1} parent=1 // pred_check_branch
      %94 = sbr.rel (0) target = $region41
    $region40: #{tpu_custom_call.1} parent=1 // pred_region
      %96 = dma.done [#allocation9], 512
    $region41: #{tpu_custom_call.1} parent=1 // pred_fallthru
      _
    // Predicated region
    $region42: #{tpu_custom_call.1} parent=1 // pred_check
      _
    $region43: #{tpu_custom_call.1} parent=1 // pred_check_branch
      %98 = sbr.rel (0) target = $region45
    $region44: #{tpu_custom_call.1} parent=1 // pred_region
      %100 = dma.done [#allocation12], 512
    $region45: #{tpu_custom_call.1} parent=1 // pred_fallthru
      _
    // Predicated region
    $region46: #{tpu_custom_call.1} parent=1 // pred_check
      _
    $region47: #{tpu_custom_call.1} parent=1 // pred_check_branch
      %102 = sbr.rel (0) target = $region49
    $region48: #{tpu_custom_call.1} parent=1 // pred_region
      %104 = dma.done [#allocation12], 512
    $region49: #{tpu_custom_call.1} parent=1 // pred_fallthru
      _
    %p105 = scmp.eq.s32.totalorder 0, 0
    // Predicated region
    $region50: #{tpu_custom_call.1} parent=1 // pred_check
      %p106 = pneg %p105
    $region51: #{tpu_custom_call.1} parent=1 // pred_check_branch
      %108 = sbr.rel (%p106) target = $region53
    $region52: #{tpu_custom_call.1} parent=1 // pred_region
      %109 = vst [vmem:[#allocation2] sm:$0xff] 0.0
      %110 = vst [vmem:[#allocation2 + $0x8] sm:$0xff] 0.0
      %111 = vst [vmem:[#allocation3] sm:$0xff] -inf
      %112 = vst [vmem:[#allocation3 + $0x8] sm:$0xff] -inf
      %113 = vst [vmem:[#allocation4] sm:$0xff] inf
      %114 = vst [vmem:[#allocation4 + $0x8] sm:$0xff] inf
    $region53: #{tpu_custom_call.1} parent=1 // pred_fallthru
      _
    %v115 = vld [vmem:[#allocation5] sm:$0xf]
    %v116 = vld [vmem:[#allocation5 + $0x4] sm:$0xf]
    %v117 = vld [vmem:[#allocation2] sm:$0xf]
    %v118 = vld [vmem:[#allocation2 + $0x8] sm:$0xf]
    %v119 = vadd.f32 %v117, %v115
    %v120 = vadd.f32 %v118, %v116
    %121 = vst [vmem:[#allocation2] sm:$0xf] %v119
    %122 = vst [vmem:[#allocation2 + $0x8] sm:$0xf] %v120
    %v123 = vld [vmem:[#allocation3] sm:$0xf]
    %v124 = vld [vmem:[#allocation3 + $0x8] sm:$0xf]
    %v125 = vmax.f32 %v123, %v115
    %v126 = vmax.f32 %v124, %v116
    %127 = vst [vmem:[#allocation3] sm:$0xf] %v125
    %128 = vst [vmem:[#allocation3 + $0x8] sm:$0xf] %v126
    %v129 = vld [vmem:[#allocation4] sm:$0xf]
    %v130 = vld [vmem:[#allocation4 + $0x8] sm:$0xf]
    %v131 = vmin.f32 %v129, %v115
    %v132 = vmin.f32 %v130, %v116
    %133 = vst [vmem:[#allocation4] sm:$0xf] %v131
    %134 = vst [vmem:[#allocation4 + $0x8] sm:$0xf] %v132
    // Predicated region
    $region54: #{tpu_custom_call.1} parent=1 // pred_check
      %p135 = pneg %p105
    $region55: #{tpu_custom_call.1} parent=1 // pred_check_branch
      %137 = sbr.rel (%p135) target = $region57
    $region56: #{tpu_custom_call.1} parent=1 // pred_region
      %v138 = vld [vmem:[#allocation2] sm:$0xff]
      %v139 = vld [vmem:[#allocation2 + $0x8] sm:$0xff]
      %v140 = vrot.slane %v138, 4
      %v141 = vadd.f32 %v138, %v140
      %v142 = vrot.slane %v141, 2
      %v143 = vadd.f32 %v141, %v142
      %v144 = vrot.slane %v143, 1
      %v145 = vadd.f32 %v143, %v144
      %v146 = vrot.slane %v139, 4
      %v147 = vadd.f32 %v139, %v146
      %v148 = vrot.slane %v147, 2
      %v149 = vadd.f32 %v147, %v148
      %v150 = vrot.slane %v149, 1
      %v151 = vadd.f32 %v149, %v150
      %v152 = vld [vmem:[#allocation3] sm:$0xff]
      %v153 = vld [vmem:[#allocation3 + $0x8] sm:$0xff]
      %v154 = vrot.slane %v152, 4
      %v155 = vmax.f32 %v152, %v154
      %v156 = vrot.slane %v155, 2
      %v157 = vmax.f32 %v155, %v156
      %v158 = vrot.slane %v157, 1
      %v159 = vmax.f32 %v157, %v158
      %v160 = vrot.slane %v153, 4
      %v161 = vmax.f32 %v153, %v160
      %v162 = vrot.slane %v161, 2
      %v163 = vmax.f32 %v161, %v162
      %v164 = vrot.slane %v163, 1
      %v165 = vmax.f32 %v163, %v164
      %v166 = vld [vmem:[#allocation4] sm:$0xff]
      %v167 = vld [vmem:[#allocation4 + $0x8] sm:$0xff]
      %v168 = vrot.slane %v166, 4
      %v169 = vmin.f32 %v166, %v168
      %v170 = vrot.slane %v169, 2
      %v171 = vmin.f32 %v169, %v170
      %v172 = vrot.slane %v171, 1
      %v173 = vmin.f32 %v171, %v172
      %v174 = vrot.slane %v167, 4
      %v175 = vmin.f32 %v167, %v174
      %v176 = vrot.slane %v175, 2
      %v177 = vmin.f32 %v175, %v176
      %v178 = vrot.slane %v177, 1
      %v179 = vmin.f32 %v177, %v178
      %182 = vrot.lane.b32.xlu0 %v145, 96
      %v183 = vpop.permute.xlu0 %182
      %184 = vrot.lane.b32.xlu0 %v151, 96
      %v185 = vpop.permute.xlu0 %184
      %v188 = vadd.f32 %v145, %v183
      %v189 = vadd.f32 %v151, %v185
      %190 = vrot.lane.b32.xlu0 %v145, 64
      %v191 = vpop.permute.xlu0 %190
      %192 = vrot.lane.b32.xlu0 %v151, 64
      %v193 = vpop.permute.xlu0 %192
      %v196 = vadd.f32 %v188, %v191
      %v197 = vadd.f32 %v189, %v193
      %198 = vrot.lane.b32.xlu0 %v145, 32
      %v199 = vpop.permute.xlu0 %198
      %200 = vrot.lane.b32.xlu0 %v151, 32
      %v201 = vpop.permute.xlu0 %200
      %v204 = vadd.f32 %v196, %v199
      %v205 = vadd.f32 %v197, %v201
      %v206 = vmul.f32 %v204, 0.0625
      %v207 = vmul.f32 %v205, 0.0625
      %210 = vrot.lane.b32.xlu0 %v159, 96
      %v211 = vpop.permute.xlu0 %210
      %212 = vrot.lane.b32.xlu0 %v165, 96
      %v213 = vpop.permute.xlu0 %212
      %v216 = vmax.f32 %v159, %v211
      %v217 = vmax.f32 %v165, %v213
      %218 = vrot.lane.b32.xlu0 %v159, 64
      %v219 = vpop.permute.xlu0 %218
      %220 = vrot.lane.b32.xlu0 %v165, 64
      %v221 = vpop.permute.xlu0 %220
      %v224 = vmax.f32 %v216, %v219
      %v225 = vmax.f32 %v217, %v221
      %226 = vrot.lane.b32.xlu0 %v159, 32
      %v227 = vpop.permute.xlu0 %226
      %228 = vrot.lane.b32.xlu0 %v165, 32
      %v229 = vpop.permute.xlu0 %228
      %v232 = vmax.f32 %v224, %v227
      %v233 = vmax.f32 %v225, %v229
      %236 = vrot.lane.b32.xlu0 %v173, 96
      %v237 = vpop.permute.xlu0 %236
      %238 = vrot.lane.b32.xlu0 %v179, 96
      %v239 = vpop.permute.xlu0 %238
      %v242 = vmin.f32 %v173, %v237
      %v243 = vmin.f32 %v179, %v239
      %244 = vrot.lane.b32.xlu0 %v173, 64
      %v245 = vpop.permute.xlu0 %244
      %246 = vrot.lane.b32.xlu0 %v179, 64
      %v247 = vpop.permute.xlu0 %246
      %v250 = vmin.f32 %v242, %v245
      %v251 = vmin.f32 %v243, %v247
      %252 = vrot.lane.b32.xlu0 %v173, 32
      %v253 = vpop.permute.xlu0 %252
      %254 = vrot.lane.b32.xlu0 %v179, 32
      %v255 = vpop.permute.xlu0 %254
      %v258 = vmin.f32 %v250, %v253
      %v259 = vmin.f32 %v251, %v255
      %v260 = vld [vmem:[#allocation8] sm:$0xff]
      %v261 = vld [vmem:[#allocation8 + $0x8] sm:$0xff]
      %v262 = vld [vmem:[#allocation8 + $0x10] sm:$0xff]
      %v263 = vld [vmem:[#allocation8 + $0x18] sm:$0xff]
      %v264 = vld [vmem:[#allocation10] sm:$0xff]
      %v265 = vld [vmem:[#allocation10 + $0x8] sm:$0xff]
      %v266 = vld [vmem:[#allocation10 + $0x10] sm:$0xff]
      %v267 = vld [vmem:[#allocation10 + $0x18] sm:$0xff]
      %v270 = vrot.slane %v233, 7
      %vm271 = vcmask 1041409
      %v272 = vsel %vm271, %v270, %v232
      %vm273 = vcmask 261120
      %v274 = vsel %vm273, %v272, 0
      %276 = vmatpush.msra.mxu0 0.0
      %277 = vmatpush.msra.mxu0 0.0
      %278 = vmatpush.msra.mxu0 0.0
      %279 = vmatpush.msra.mxu0 0.0
      %280 = vmatpush.msra.mxu0 0.0
      %281 = vmatpush.msra.mxu0 0.0
      %282 = vmatpush.msra.mxu0 0.0
      %283 = vmatpush.msra.mxu0 0.0
      %284 = vmatpush.msra.mxu0 0.0
      %285 = vmatpush.msra.mxu0 0.0
      %286 = vmatpush.msra.mxu0 0.0
      %287 = vmatpush.msra.mxu0 0.0
      %288 = vmatpush.msra.mxu0 %v267
      %289 = vmatpush.msra.mxu0 %v266
      %290 = vmatpush.msra.mxu0 %v265
      %291 = vmatpush.msra.mxu0 %v264
      %292 = vmatmul.f32.gmra.mxu0 %v274
      %v293 = vpop.f32.mrf.mxu0
      %v294 = vadd.f32 0.0, %v293
      %295 = vdwg.mxu0
      %v298 = vrot.slane %v207, 7
      %v299 = vsel %vm271, %v298, %v206
      %v300 = vsel %vm273, %v299, 0
      %302 = vmatpush.msra.mxu0 0.0
      %303 = vmatpush.msra.mxu0 0.0
      %304 = vmatpush.msra.mxu0 0.0
      %305 = vmatpush.msra.mxu0 0.0
      %306 = vmatpush.msra.mxu0 0.0
      %307 = vmatpush.msra.mxu0 0.0
      %308 = vmatpush.msra.mxu0 0.0
      %309 = vmatpush.msra.mxu0 0.0
      %310 = vmatpush.msra.mxu0 0.0
      %311 = vmatpush.msra.mxu0 0.0
      %312 = vmatpush.msra.mxu0 0.0
      %313 = vmatpush.msra.mxu0 0.0
      %314 = vmatpush.msra.mxu0 %v263
      %315 = vmatpush.msra.mxu0 %v262
      %316 = vmatpush.msra.mxu0 %v261
      %317 = vmatpush.msra.mxu0 %v260
      %318 = vmatmul.f32.gmra.mxu0 %v300
      %v319 = vpop.f32.mrf.mxu0
      %v320 = vadd.f32 %v294, %v319
      %321 = vdwg.mxu0
      %v322 = vld [vmem:[#allocation11] sm:$0xff]
      %v323 = vld [vmem:[#allocation11 + $0x8] sm:$0xff]
      %v324 = vld [vmem:[#allocation11 + $0x10] sm:$0xff]
      %v325 = vld [vmem:[#allocation11 + $0x18] sm:$0xff]
      %v328 = vrot.slane %v259, 7
      %v329 = vsel %vm271, %v328, %v258
      %v330 = vsel %vm273, %v329, 0
      %332 = vmatpush.msra.mxu0 0.0
      %333 = vmatpush.msra.mxu0 0.0
      %334 = vmatpush.msra.mxu0 0.0
      %335 = vmatpush.msra.mxu0 0.0
      %336 = vmatpush.msra.mxu0 0.0
      %337 = vmatpush.msra.mxu0 0.0
      %338 = vmatpush.msra.mxu0 0.0
      %339 = vmatpush.msra.mxu0 0.0
      %340 = vmatpush.msra.mxu0 0.0
      %341 = vmatpush.msra.mxu0 0.0
      %342 = vmatpush.msra.mxu0 0.0
      %343 = vmatpush.msra.mxu0 0.0
      %344 = vmatpush.msra.mxu0 %v325
      %345 = vmatpush.msra.mxu0 %v324
      %346 = vmatpush.msra.mxu0 %v323
      %347 = vmatpush.msra.mxu0 %v322
      %348 = vmatmul.f32.gmra.mxu0 %v330
      %v349 = vpop.f32.mrf.mxu0
      %v350 = vadd.f32 0.0, %v349
      %351 = vdwg.mxu0
      %v352 = vadd.f32 %v320, %v350
      %v353 = vld [vmem:[%s4] sm:$0x1]
      %v355 = vperm.slane %v353, 0
      %v357 = vadd.f32 %v352, %v355
      %v358 = vmax.f32 %v357, 0.0
      %v359 = vld [vmem:[#allocation13] sm:$0xff]
      %v360 = vld [vmem:[#allocation13 + $0x8] sm:$0xff]
      %v361 = vld [vmem:[#allocation13 + $0x10] sm:$0xff]
      %v362 = vld [vmem:[#allocation13 + $0x18] sm:$0xff]
      %v363 = vld [vmem:[%s6] sm:$0x1]
      %v365 = vperm.slane %v363, 0
      %v368 = vsel %vm273, %v358, 0
      %370 = vmatpush.msra.mxu0 0.0
      %371 = vmatpush.msra.mxu0 0.0
      %372 = vmatpush.msra.mxu0 0.0
      %373 = vmatpush.msra.mxu0 0.0
      %374 = vmatpush.msra.mxu0 0.0
      %375 = vmatpush.msra.mxu0 0.0
      %376 = vmatpush.msra.mxu0 0.0
      %377 = vmatpush.msra.mxu0 0.0
      %378 = vmatpush.msra.mxu0 0.0
      %379 = vmatpush.msra.mxu0 0.0
      %380 = vmatpush.msra.mxu0 0.0
      %381 = vmatpush.msra.mxu0 0.0
      %382 = vmatpush.msra.mxu0 %v362
      %383 = vmatpush.msra.mxu0 %v361
      %384 = vmatpush.msra.mxu0 %v360
      %385 = vmatpush.msra.mxu0 %v359
      %386 = vmatmul.f32.gmra.mxu0 %v368
      %v387 = vpop.f32.mrf.mxu0
      %v388 = vadd.f32 %v365, %v387
      %389 = vdwg.mxu0
      %390 = vst [vmem:[#allocation14] sm:$0x3] %v388
    $region57: #{tpu_custom_call.1} parent=1 // pred_fallthru
      _
    // Predicated region
    $region58: #{tpu_custom_call.1} parent=1 // pred_check
      _
    $region59: #{tpu_custom_call.1} parent=1 // pred_check_branch
      %392 = sbr.rel (0) target = $region61
    $region60: #{tpu_custom_call.1} parent=1 // pred_region
      %394 = vsyncadd [#allocation7], 0
      %s396 = sshll.u32 [#allocation14], 4
      %s397 = int_to_ptr.vmem [resolvable:$true] %s396
      %s398 = sshll.u32 %s7, 4
      %s399 = int_to_ptr.hbm [resolvable:$true] %s398
      %401 = dma.vmem_to_hbm [thread:$0]  %s397, 32, %s399, [#allocation7]
    $region61: #{tpu_custom_call.1} parent=1 // pred_fallthru
      _
    // Predicated region
    $region62: #{tpu_custom_call.1} parent=1 // pred_check
      _
    $region63: #{tpu_custom_call.1} parent=1 // pred_check_branch
      %403 = sbr.rel (0) target = $region65
    $region64: #{tpu_custom_call.1} parent=1 // pred_region
      %405 = dma.done [#allocation7], 32
    $region65: #{tpu_custom_call.1} parent=1 // pred_fallthru
      _
    %406 = vsyncpa [#allocation6], 1
    %407 = vsyncpa [#allocation9], 1
    %408 = vsyncpa [#allocation12], 1
    %409 = vsyncpa [#allocation7], 1

// kernel: tpu_custom_call.1
$region0: #{tpu_custom_call.1}
  #allocation0 [shape = 'u32[]', space=smem, size = 0x4, offset = 0x4, fixed_abs, tag = 'smem constant byte address 0x4 - core index']
  #allocation1 [shape = 'u32[72,128]{1,0:T(1,128)}', space=vmem, size = 0x9000, scoped, tag = 'internal scratch']
  #allocation2 [shape = 'f32[2,8,128]{2,1,0:T(8,128)}', space=vmem, size = 0x2000, scoped, tag = 'scratch operand']
  #allocation3 [shape = 'f32[2,8,128]{2,1,0:T(8,128)}', space=vmem, size = 0x2000, scoped, tag = 'scratch operand']
  #allocation4 [shape = 'f32[2,8,128]{2,1,0:T(8,128)}', space=vmem, size = 0x2000, scoped, tag = 'scratch operand']
  %s0 = inlined_call_operand.hbm [shape: f32[2,4,128], index: 0, kind: input, shape index: {}]
  %s1 = inlined_call_operand.hbm [shape: f32[32,32], index: 1, kind: input, shape index: {}]
  %s2 = inlined_call_operand.hbm [shape: f32[32,32], index: 2, kind: input, shape index: {}]
  %s3 = inlined_call_operand.hbm [shape: f32[32,32], index: 3, kind: input, shape index: {}]
  %s4 = inlined_call_operand.vmem [shape: f32[1,32], index: 4, kind: input, shape index: {}]
  %s5 = inlined_call_operand.hbm [shape: f32[32,128], index: 5, kind: input, shape index: {}]
  %s6 = inlined_call_operand.vmem [shape: f32[1,128], index: 6, kind: input, shape index: {}]
  %s7 = inlined_call_operand.hbm [shape: f32[2,128], index: 7, kind: output, shape index: {}]
  %s8 = sld [smem:[#allocation0]]
  $region66: #{tpu_custom_call.1} parent=0
    _
  %s10 = ssub.s32 1, %s8
  %s11 = scalar_select 0, %s10, %s8
  $region1: #{tpu_custom_call.1} parent=0
    #allocation5 [shape = 'u8[4096]{0}', space=vmem, size = 0x1000, scoped, tag = 'input window, operand 0, single buffered']
    #allocation6 [shape = 's32[1]{0}', space=sflag, size = 0x4, scoped, tag = 'scoped memory for tpu_custom_call.1']
    #allocation7 [shape = 's32[1]{0}', space=sflag, size = 0x4, scoped, tag = 'scoped memory for tpu_custom_call.1']
    #allocation8 [shape = 'u8[16384]{0}', space=vmem, size = 0x4000, scoped, tag = 'input window, operand 1, single buffered']
    #allocation9 [shape = 's32[1]{0}', space=sflag, size = 0x4, scoped, tag = 'scoped memory for tpu_custom_call.1']
    #allocation10 [shape = 'u8[16384]{0}', space=vmem, size = 0x4000, scoped, tag = 'input window, operand 2, single buffered']
    #allocation11 [shape = 'u8[16384]{0}', space=vmem, size = 0x4000, scoped, tag = 'input window, operand 3, single buffered']
    #allocation12 [shape = 's32[1]{0}', space=sflag, size = 0x4, scoped, tag = 'scoped memory for tpu_custom_call.1']
    #allocation13 [shape = 'u8[16384]{0}', space=vmem, size = 0x4000, scoped, tag = 'input window, operand 5, single buffered']
    #allocation14 [shape = 'u8[1024]{0}', space=vmem, size = 0x400, scoped, tag = 'output window, operand 0, single buffered']
    %12 = vsyncpa [#allocation6], 0
    %13 = vsyncpa [#allocation9], 0
    %14 = vsyncpa [#allocation12], 0
    %15 = vsyncpa [#allocation7], 0
    // Predicated region
    $region2: #{tpu_custom_call.1} parent=1 // pred_check
      _
    $region3: #{tpu_custom_call.1} parent=1 // pred_check_branch
      %17 = sbr.rel (0) target = $region5
    $region4: #{tpu_custom_call.1} parent=1 // pred_region
      %19 = vsyncadd [#allocation6], 0
      %s20 = sshll.u32 %s0, 4
      %s21 = int_to_ptr.hbm [resolvable:$true] %s20
      %s22 = sshll.u32 [#allocation5], 4
      %s23 = int_to_ptr.vmem [resolvable:$true] %s22
      %28 = dma.hbm_to_vmem [thread:$0]  %s21, 128, %s23, [#allocation6], 64, 64, 4
    $region5: #{tpu_custom_call.1} parent=1 // pred_fallthru
      _
    // Predicated region
    $region6: #{tpu_custom_call.1} parent=1 // pred_check
      _
    $region7: #{tpu_custom_call.1} parent=1 // pred_check_branch
      %30 = sbr.rel (0) target = $region9
    $region8: #{tpu_custom_call.1} parent=1 // pred_region
      %32 = vsyncadd [#allocation9], 0
      %s33 = sshll.u32 %s1, 4
      %s34 = int_to_ptr.hbm [resolvable:$true] %s33
      %s35 = sshll.u32 [#allocation8], 4
      %s36 = int_to_ptr.vmem [resolvable:$true] %s35
      %41 = dma.hbm_to_vmem [thread:$0]  %s34, 512, %s36, [#allocation9], 128, 128, 8
    $region9: #{tpu_custom_call.1} parent=1 // pred_fallthru
      _
    // Predicated region
    $region10: #{tpu_custom_call.1} parent=1 // pred_check
      _
    $region11: #{tpu_custom_call.1} parent=1 // pred_check_branch
      %43 = sbr.rel (0) target = $region13
    $region12: #{tpu_custom_call.1} parent=1 // pred_region
      %45 = vsyncadd [#allocation9], 0
      %s46 = sshll.u32 %s2, 4
      %s47 = int_to_ptr.hbm [resolvable:$true] %s46
      %s48 = sshll.u32 [#allocation10], 4
      %s49 = int_to_ptr.vmem [resolvable:$true] %s48
      %54 = dma.hbm_to_vmem [thread:$0]  %s47, 512, %s49, [#allocation9], 128, 128, 8
    $region13: #{tpu_custom_call.1} parent=1 // pred_fallthru
      _
    // Predicated region
    $region14: #{tpu_custom_call.1} parent=1 // pred_check
      _
    $region15: #{tpu_custom_call.1} parent=1 // pred_check_branch
      %56 = sbr.rel (0) target = $region17
    $region16: #{tpu_custom_call.1} parent=1 // pred_region
      %58 = vsyncadd [#allocation12], 0
      %s59 = sshll.u32 %s3, 4
      %s60 = int_to_ptr.hbm [resolvable:$true] %s59
      %s61 = sshll.u32 [#allocation11], 4
      %s62 = int_to_ptr.vmem [resolvable:$true] %s61
      %67 = dma.hbm_to_vmem [thread:$0]  %s60, 512, %s62, [#allocation12], 128, 128, 8
    $region17: #{tpu_custom_call.1} parent=1 // pred_fallthru
      _
    // Predicated region
    $region18: #{tpu_custom_call.1} parent=1 // pred_check
      _
    $region19: #{tpu_custom_call.1} parent=1 // pred_check_branch
      %69 = sbr.rel (0) target = $region21
    $region20: #{tpu_custom_call.1} parent=1 // pred_region
      _
    $region21: #{tpu_custom_call.1} parent=1 // pred_fallthru
      _
    // Predicated region
    $region22: #{tpu_custom_call.1} parent=1 // pred_check
      _
    $region23: #{tpu_custom_call.1} parent=1 // pred_check_branch
      %71 = sbr.rel (0) target = $region25
    $region24: #{tpu_custom_call.1} parent=1 // pred_region
      %73 = vsyncadd [#allocation12], 0
      %s74 = sshll.u32 %s5, 4
      %s75 = int_to_ptr.hbm [resolvable:$true] %s74
      %s76 = sshll.u32 [#allocation13], 4
      %s77 = int_to_ptr.vmem [resolvable:$true] %s76
      %82 = dma.hbm_to_vmem [thread:$0]  %s75, 512, %s77, [#allocation12], 128, 128, 8
    $region25: #{tpu_custom_call.1} parent=1 // pred_fallthru
      _
    // Predicated region
    $region26: #{tpu_custom_call.1} parent=1 // pred_check
      _
    $region27: #{tpu_custom_call.1} parent=1 // pred_check_branch
      %84 = sbr.rel (0) target = $region29
    $region28: #{tpu_custom_call.1} parent=1 // pred_region
      _
    $region29: #{tpu_custom_call.1} parent=1 // pred_fallthru
      _
    // Predicated region
    $region30: #{tpu_custom_call.1} parent=1 // pred_check
      _
    $region31: #{tpu_custom_call.1} parent=1 // pred_check_branch
      %86 = sbr.rel (0) target = $region33
    $region32: #{tpu_custom_call.1} parent=1 // pred_region
      %88 = dma.done [#allocation6], 128
    $region33: #{tpu_custom_call.1} parent=1 // pred_fallthru
      _
    // Predicated region
    $region34: #{tpu_custom_call.1} parent=1 // pred_check
      _
    $region35: #{tpu_custom_call.1} parent=1 // pred_check_branch
      %90 = sbr.rel (0) target = $region37
    $region36: #{tpu_custom_call.1} parent=1 // pred_region
      %92 = dma.done [#allocation9], 512
    $region37: #{tpu_custom_call.1} parent=1 // pred_fallthru
      _
    // Predicated region
    $region38: #{tpu_custom_call.1} parent=1 // pred_check
      _
    $region39: #{tpu_custom_call.1} parent=1 // pred_check_branch
      %94 = sbr.rel (0) target = $region41
    $region40: #{tpu_custom_call.1} parent=1 // pred_region
      %96 = dma.done [#allocation9], 512
    $region41: #{tpu_custom_call.1} parent=1 // pred_fallthru
      _
    // Predicated region
    $region42: #{tpu_custom_call.1} parent=1 // pred_check
      _
    $region43: #{tpu_custom_call.1} parent=1 // pred_check_branch
      %98 = sbr.rel (0) target = $region45
    $region44: #{tpu_custom_call.1} parent=1 // pred_region
      %100 = dma.done [#allocation12], 512
    $region45: #{tpu_custom_call.1} parent=1 // pred_fallthru
      _
    // Predicated region
    $region46: #{tpu_custom_call.1} parent=1 // pred_check
      _
    $region47: #{tpu_custom_call.1} parent=1 // pred_check_branch
      %102 = sbr.rel (0) target = $region49
    $region48: #{tpu_custom_call.1} parent=1 // pred_region
      %104 = dma.done [#allocation12], 512
    $region49: #{tpu_custom_call.1} parent=1 // pred_fallthru
      _
    %p105 = scmp.eq.s32.totalorder 0, 0
    // Predicated region
    $region50: #{tpu_custom_call.1} parent=1 // pred_check
      %p106 = pneg %p105
    $region51: #{tpu_custom_call.1} parent=1 // pred_check_branch
      %108 = sbr.rel (%p106) target = $region53
    $region52: #{tpu_custom_call.1} parent=1 // pred_region
      %109 = vst [vmem:[#allocation2] sm:$0xff] 0.0
      %110 = vst [vmem:[#allocation2 + $0x8] sm:$0xff] 0.0
      %111 = vst [vmem:[#allocation3] sm:$0xff] -inf
      %112 = vst [vmem:[#allocation3 + $0x8] sm:$0xff] -inf
      %113 = vst [vmem:[#allocation4] sm:$0xff] inf
      %114 = vst [vmem:[#allocation4 + $0x8] sm:$0xff] inf
    $region53: #{tpu_custom_call.1} parent=1 // pred_fallthru
      _
    %v115 = vld [vmem:[#allocation5] sm:$0xf]
    %v116 = vld [vmem:[#allocation5 + $0x4] sm:$0xf]
    %v117 = vld [vmem:[#allocation2] sm:$0xf]
    %v118 = vld [vmem:[#allocation2 + $0x8] sm:$0xf]
    %v119 = vadd.f32 %v117, %v115
    %v120 = vadd.f32 %v118, %v116
    %121 = vst [vmem:[#allocation2] sm:$0xf] %v119
    %122 = vst [vmem:[#allocation2 + $0x8] sm:$0xf] %v120
    %v123 = vld [vmem:[#allocation3] sm:$0xf]
    %v124 = vld [vmem:[#allocation3 + $0x8] sm:$0xf]
    %v125 = vmax.f32 %v123, %v115
    %v126 = vmax.f32 %v124, %v116
    %127 = vst [vmem:[#allocation3] sm:$0xf] %v125
    %128 = vst [vmem:[#allocation3 + $0x8] sm:$0xf] %v126
    %v129 = vld [vmem:[#allocation4] sm:$0xf]
    %v130 = vld [vmem:[#allocation4 + $0x8] sm:$0xf]
    %v131 = vmin.f32 %v129, %v115
    %v132 = vmin.f32 %v130, %v116
    %133 = vst [vmem:[#allocation4] sm:$0xf] %v131
    %134 = vst [vmem:[#allocation4 + $0x8] sm:$0xf] %v132
    // Predicated region
    $region54: #{tpu_custom_call.1} parent=1 // pred_check
      %p135 = pneg %p105
    $region55: #{tpu_custom_call.1} parent=1 // pred_check_branch
      %137 = sbr.rel (%p135) target = $region57
    $region56: #{tpu_custom_call.1} parent=1 // pred_region
      %v138 = vld [vmem:[#allocation2] sm:$0xff]
      %v139 = vld [vmem:[#allocation2 + $0x8] sm:$0xff]
      %v140 = vrot.slane %v138, 4
      %v141 = vadd.f32 %v138, %v140
      %v142 = vrot.slane %v141, 2
      %v143 = vadd.f32 %v141, %v142
      %v144 = vrot.slane %v143, 1
      %v145 = vadd.f32 %v143, %v144
      %v146 = vrot.slane %v139, 4
      %v147 = vadd.f32 %v139, %v146
      %v148 = vrot.slane %v147, 2
      %v149 = vadd.f32 %v147, %v148
      %v150 = vrot.slane %v149, 1
      %v151 = vadd.f32 %v149, %v150
      %v152 = vld [vmem:[#allocation3] sm:$0xff]
      %v153 = vld [vmem:[#allocation3 + $0x8] sm:$0xff]
      %v154 = vrot.slane %v152, 4
      %v155 = vmax.f32 %v152, %v154
      %v156 = vrot.slane %v155, 2
      %v157 = vmax.f32 %v155, %v156
      %v158 = vrot.slane %v157, 1
      %v159 = vmax.f32 %v157, %v158
      %v160 = vrot.slane %v153, 4
      %v161 = vmax.f32 %v153, %v160
      %v162 = vrot.slane %v161, 2
      %v163 = vmax.f32 %v161, %v162
      %v164 = vrot.slane %v163, 1
      %v165 = vmax.f32 %v163, %v164
      %v166 = vld [vmem:[#allocation4] sm:$0xff]
      %v167 = vld [vmem:[#allocation4 + $0x8] sm:$0xff]
      %v168 = vrot.slane %v166, 4
      %v169 = vmin.f32 %v166, %v168
      %v170 = vrot.slane %v169, 2
      %v171 = vmin.f32 %v169, %v170
      %v172 = vrot.slane %v171, 1
      %v173 = vmin.f32 %v171, %v172
      %v174 = vrot.slane %v167, 4
      %v175 = vmin.f32 %v167, %v174
      %v176 = vrot.slane %v175, 2
      %v177 = vmin.f32 %v175, %v176
      %v178 = vrot.slane %v177, 1
      %v179 = vmin.f32 %v177, %v178
      %182 = vrot.lane.b32.xlu0 %v145, 96
      %v183 = vpop.permute.xlu0 %182
      %184 = vrot.lane.b32.xlu0 %v151, 96
      %v185 = vpop.permute.xlu0 %184
      %v188 = vadd.f32 %v145, %v183
      %v189 = vadd.f32 %v151, %v185
      %190 = vrot.lane.b32.xlu0 %v145, 64
      %v191 = vpop.permute.xlu0 %190
      %192 = vrot.lane.b32.xlu0 %v151, 64
      %v193 = vpop.permute.xlu0 %192
      %v196 = vadd.f32 %v188, %v191
      %v197 = vadd.f32 %v189, %v193
      %198 = vrot.lane.b32.xlu0 %v145, 32
      %v199 = vpop.permute.xlu0 %198
      %200 = vrot.lane.b32.xlu0 %v151, 32
      %v201 = vpop.permute.xlu0 %200
      %v204 = vadd.f32 %v196, %v199
      %v205 = vadd.f32 %v197, %v201
      %v206 = vmul.f32 %v204, 0.0625
      %v207 = vmul.f32 %v205, 0.0625
      %210 = vrot.lane.b32.xlu0 %v159, 96
      %v211 = vpop.permute.xlu0 %210
      %212 = vrot.lane.b32.xlu0 %v165, 96
      %v213 = vpop.permute.xlu0 %212
      %v216 = vmax.f32 %v159, %v211
      %v217 = vmax.f32 %v165, %v213
      %218 = vrot.lane.b32.xlu0 %v159, 64
      %v219 = vpop.permute.xlu0 %218
      %220 = vrot.lane.b32.xlu0 %v165, 64
      %v221 = vpop.permute.xlu0 %220
      %v224 = vmax.f32 %v216, %v219
      %v225 = vmax.f32 %v217, %v221
      %226 = vrot.lane.b32.xlu0 %v159, 32
      %v227 = vpop.permute.xlu0 %226
      %228 = vrot.lane.b32.xlu0 %v165, 32
      %v229 = vpop.permute.xlu0 %228
      %v232 = vmax.f32 %v224, %v227
      %v233 = vmax.f32 %v225, %v229
      %236 = vrot.lane.b32.xlu0 %v173, 96
      %v237 = vpop.permute.xlu0 %236
      %238 = vrot.lane.b32.xlu0 %v179, 96
      %v239 = vpop.permute.xlu0 %238
      %v242 = vmin.f32 %v173, %v237
      %v243 = vmin.f32 %v179, %v239
      %244 = vrot.lane.b32.xlu0 %v173, 64
      %v245 = vpop.permute.xlu0 %244
      %246 = vrot.lane.b32.xlu0 %v179, 64
      %v247 = vpop.permute.xlu0 %246
      %v250 = vmin.f32 %v242, %v245
      %v251 = vmin.f32 %v243, %v247
      %252 = vrot.lane.b32.xlu0 %v173, 32
      %v253 = vpop.permute.xlu0 %252
      %254 = vrot.lane.b32.xlu0 %v179, 32
      %v255 = vpop.permute.xlu0 %254
      %v258 = vmin.f32 %v250, %v253
      %v259 = vmin.f32 %v251, %v255
      %v260 = vld [vmem:[#allocation8] sm:$0xff]
      %v261 = vld [vmem:[#allocation8 + $0x8] sm:$0xff]
      %v262 = vld [vmem:[#allocation8 + $0x10] sm:$0xff]
      %v263 = vld [vmem:[#allocation8 + $0x18] sm:$0xff]
      %v264 = vld [vmem:[#allocation10] sm:$0xff]
      %v265 = vld [vmem:[#allocation10 + $0x8] sm:$0xff]
      %v266 = vld [vmem:[#allocation10 + $0x10] sm:$0xff]
      %v267 = vld [vmem:[#allocation10 + $0x18] sm:$0xff]
      %v270 = vrot.slane %v233, 7
      %vm271 = vcmask 1041409
      %v272 = vsel %vm271, %v270, %v232
      %vm273 = vcmask 261120
      %v274 = vsel %vm273, %v272, 0
      %276 = vmatpush.msra.mxu0 0.0
      %277 = vmatpush.msra.mxu0 0.0
      %278 = vmatpush.msra.mxu0 0.0
      %279 = vmatpush.msra.mxu0 0.0
      %280 = vmatpush.msra.mxu0 0.0
      %281 = vmatpush.msra.mxu0 0.0
      %282 = vmatpush.msra.mxu0 0.0
      %283 = vmatpush.msra.mxu0 0.0
      %284 = vmatpush.msra.mxu0 0.0
      %285 = vmatpush.msra.mxu0 0.0
      %286 = vmatpush.msra.mxu0 0.0
      %287 = vmatpush.msra.mxu0 0.0
      %288 = vmatpush.msra.mxu0 %v267
      %289 = vmatpush.msra.mxu0 %v266
      %290 = vmatpush.msra.mxu0 %v265
      %291 = vmatpush.msra.mxu0 %v264
      %292 = vmatmul.f32.gmra.mxu0 %v274
      %v293 = vpop.f32.mrf.mxu0
      %v294 = vadd.f32 0.0, %v293
      %295 = vdwg.mxu0
      %v298 = vrot.slane %v207, 7
      %v299 = vsel %vm271, %v298, %v206
      %v300 = vsel %vm273, %v299, 0
      %302 = vmatpush.msra.mxu0 0.0
      %303 = vmatpush.msra.mxu0 0.0
      %304 = vmatpush.msra.mxu0 0.0
      %305 = vmatpush.msra.mxu0 0.0
      %306 = vmatpush.msra.mxu0 0.0
      %307 = vmatpush.msra.mxu0 0.0
      %308 = vmatpush.msra.mxu0 0.0
      %309 = vmatpush.msra.mxu0 0.0
      %310 = vmatpush.msra.mxu0 0.0
      %311 = vmatpush.msra.mxu0 0.0
      %312 = vmatpush.msra.mxu0 0.0
      %313 = vmatpush.msra.mxu0 0.0
      %314 = vmatpush.msra.mxu0 %v263
      %315 = vmatpush.msra.mxu0 %v262
      %316 = vmatpush.msra.mxu0 %v261
      %317 = vmatpush.msra.mxu0 %v260
      %318 = vmatmul.f32.gmra.mxu0 %v300
      %v319 = vpop.f32.mrf.mxu0
      %v320 = vadd.f32 %v294, %v319
      %321 = vdwg.mxu0
      %v322 = vld [vmem:[#allocation11] sm:$0xff]
      %v323 = vld [vmem:[#allocation11 + $0x8] sm:$0xff]
      %v324 = vld [vmem:[#allocation11 + $0x10] sm:$0xff]
      %v325 = vld [vmem:[#allocation11 + $0x18] sm:$0xff]
      %v328 = vrot.slane %v259, 7
      %v329 = vsel %vm271, %v328, %v258
      %v330 = vsel %vm273, %v329, 0
      %332 = vmatpush.msra.mxu0 0.0
      %333 = vmatpush.msra.mxu0 0.0
      %334 = vmatpush.msra.mxu0 0.0
      %335 = vmatpush.msra.mxu0 0.0
      %336 = vmatpush.msra.mxu0 0.0
      %337 = vmatpush.msra.mxu0 0.0
      %338 = vmatpush.msra.mxu0 0.0
      %339 = vmatpush.msra.mxu0 0.0
      %340 = vmatpush.msra.mxu0 0.0
      %341 = vmatpush.msra.mxu0 0.0
      %342 = vmatpush.msra.mxu0 0.0
      %343 = vmatpush.msra.mxu0 0.0
      %344 = vmatpush.msra.mxu0 %v325
      %345 = vmatpush.msra.mxu0 %v324
      %346 = vmatpush.msra.mxu0 %v323
      %347 = vmatpush.msra.mxu0 %v322
      %348 = vmatmul.f32.gmra.mxu0 %v330
      %v349 = vpop.f32.mrf.mxu0
      %v350 = vadd.f32 0.0, %v349
      %351 = vdwg.mxu0
      %v352 = vadd.f32 %v320, %v350
      %v353 = vld [vmem:[%s4] sm:$0x1]
      %v355 = vperm.slane %v353, 0
      %v357 = vadd.f32 %v352, %v355
      %v358 = vmax.f32 %v357, 0.0
      %v359 = vld [vmem:[#allocation13] sm:$0xff]
      %v360 = vld [vmem:[#allocation13 + $0x8] sm:$0xff]
      %v361 = vld [vmem:[#allocation13 + $0x10] sm:$0xff]
      %v362 = vld [vmem:[#allocation13 + $0x18] sm:$0xff]
      %v363 = vld [vmem:[%s6] sm:$0x1]
      %v365 = vperm.slane %v363, 0
      %v368 = vsel %vm273, %v358, 0
      %370 = vmatpush.msra.mxu0 0.0
      %371 = vmatpush.msra.mxu0 0.0
      %372 = vmatpush.msra.mxu0 0.0
      %373 = vmatpush.msra.mxu0 0.0
      %374 = vmatpush.msra.mxu0 0.0
      %375 = vmatpush.msra.mxu0 0.0
      %376 = vmatpush.msra.mxu0 0.0
      %377 = vmatpush.msra.mxu0 0.0
      %378 = vmatpush.msra.mxu0 0.0
      %379 = vmatpush.msra.mxu0 0.0
      %380 = vmatpush.msra.mxu0 0.0
      %381 = vmatpush.msra.mxu0 0.0
      %382 = vmatpush.msra.mxu0 %v362
      %383 = vmatpush.msra.mxu0 %v361
      %384 = vmatpush.msra.mxu0 %v360
      %385 = vmatpush.msra.mxu0 %v359
      %386 = vmatmul.f32.gmra.mxu0 %v368
      %v387 = vpop.f32.mrf.mxu0
      %v388 = vadd.f32 %v365, %v387
      %389 = vdwg.mxu0
      %390 = vst [vmem:[#allocation14] sm:$0x3] %v388
    $region57: #{tpu_custom_call.1} parent=1 // pred_fallthru
      _
    // Predicated region
    $region58: #{tpu_custom_call.1} parent=1 // pred_check
      _
    $region59: #{tpu_custom_call.1} parent=1 // pred_check_branch
      %392 = sbr.rel (0) target = $region61
    $region60: #{tpu_custom_call.1} parent=1 // pred_region
      %394 = vsyncadd [#allocation7], 0
      %s396 = sshll.u32 [#allocation14], 4
      %s397 = int_to_ptr.vmem [resolvable:$true] %s396
      %s398 = sshll.u32 %s7, 4
      %s399 = int_to_ptr.hbm [resolvable:$true] %s398
      %401 = dma.vmem_to_hbm [thread:$0]  %s397, 32, %s399, [#allocation7]
    $region61: #{tpu_custom_call.1} parent=1 // pred_fallthru
      _
    // Predicated region
    $region62: #{tpu_custom_call.1} parent=1 // pred_check
      _
    $region63: #{tpu_custom_call.1} parent=1 // pred_check_branch
      %403 = sbr.rel (0) target = $region65
    $region64: #{tpu_custom_call.1} parent=1 // pred_region
      %405 = dma.done [#allocation7], 32
    $region65: #{tpu_custom_call.1} parent=1 // pred_fallthru
      _
    %406 = vsyncpa [#allocation6], 1
    %407 = vsyncpa [#allocation9], 1
    %408 = vsyncpa [#allocation12], 1
    %409 = vsyncpa [#allocation7], 1

</llo_original>
